<compile_context>
chip_gen: v7x
topology: tpu7x:2x2x1
jax: 0.10.0
libtpu: 0.0.40
codegen_flags: <defaults>
</compile_context>

<pallas_src>
import functools

import jax
import jax.numpy as jnp
from jax.experimental import pallas as pl
from jax.experimental.pallas import tpu as pltpu


# ----------------------------- small helpers -----------------------------

def _round_up(v, m):
    return ((v + m - 1) // m) * m


def _hann_window(win_length):
    # torch.hann_window default (periodic=True): 0.5 - 0.5*cos(2*pi*n/N)
    n = jnp.arange(win_length, dtype=jnp.float32)
    return 0.5 - 0.5 * jnp.cos(2.0 * jnp.pi * n / win_length)


def _stft_basis(fft_size, win_length, fh):
    """Window-folded DFT basis, cos|(-sin) fused and zero-padded to lane width.

    Returns (fft_size, 2*fh): columns [0, n_freq) are the windowed cos basis, columns
    [fh, fh + n_freq) are the windowed -sin basis; padded columns are exactly zero.
    real = frames @ basis[:, :fh], imag = frames @ basis[:, fh:].
    """
    n_freq = fft_size // 2 + 1
    w = _hann_window(win_length)
    left = (fft_size - win_length) // 2
    w_full = jnp.zeros((fft_size,), jnp.float32).at[left:left + win_length].set(w)
    n_i = jnp.arange(fft_size, dtype=jnp.int32)[:, None]
    f_i = jnp.arange(n_freq, dtype=jnp.int32)[None, :]
    ang = (2.0 * jnp.pi / fft_size) * ((n_i * f_i) % fft_size).astype(jnp.float32)
    cos_mat = w_full[:, None] * jnp.cos(ang)
    sin_mat = -w_full[:, None] * jnp.sin(ang)
    pad = fh - n_freq
    cos_mat = jnp.pad(cos_mat, ((0, 0), (0, pad)))
    sin_mat = jnp.pad(sin_mat, ((0, 0), (0, pad)))
    return jnp.concatenate([cos_mat, sin_mat], axis=1)   # (K, 2*fh)


def _frame(x, fft_size, hop_size):
    """torch.stft framing with center=True, pad_mode='reflect'. x: (B, T)."""
    pad = fft_size // 2
    xp = jnp.pad(x, ((0, 0), (pad, pad)), mode="reflect")
    T = x.shape[1]
    n_frames = 1 + T // hop_size
    idx = jnp.arange(n_frames)[:, None] * hop_size + jnp.arange(fft_size)[None, :]
    return xp[:, idx]  # (B, n_frames, fft_size)


# ----------------------------- in-kernel atan2 -----------------------------

_PI = 3.14159265358979323846
_PI_2 = 1.5707963267948966
_PI_4 = 0.7853981633974483
_TAN_PI_8 = 0.41421356237309503


def _atan2(y, x):
    """Branchless f32 atan2(y, x) (Cephes polynomial, approx EUP reciprocals)."""
    ax = jnp.abs(x)
    ay = jnp.abs(y)
    hi = jnp.maximum(ax, ay)
    lo = jnp.minimum(ax, ay)
    t = lo * pl.reciprocal(jnp.maximum(hi, 1e-30), approx=True)   # in [0, ~1]
    # range-reduce to |z| <= tan(pi/8) via atan(t) = pi/4 + atan((t - 1) / (t + 1))
    big = t > _TAN_PI_8
    z = jnp.where(big, (t - 1.0) * pl.reciprocal(t + 1.0, approx=True), t)
    z2 = z * z
    p = 8.05374449538e-2
    p = p * z2 - 1.38776856032e-1
    p = p * z2 + 1.99777106478e-1
    p = p * z2 - 3.33329491539e-1
    r = p * z2 * z + z + jnp.where(big, _PI_4, 0.0)
    r = jnp.where(ay > ax, _PI_2 - r, r)               # undo the min/max swap
    r = jnp.where(x < 0.0, _PI - r, r)                 # quadrants II / III
    return jnp.where(y < 0.0, -r, r)


# ----------------------------------- Pallas kernel -------------------------------------

def _stft_loss_kernel(frames_ref, basis_ref,
                      log_ref, sqd_ref, ysq_ref, phs_ref,
                      acc_z, *, tm, fh, n_k):
    k = pl.program_id(1)

    # One fused MXU dot per grid step: [x-rows ; y-rows] @ [cos | -sin]   -> f32
    z = jnp.dot(frames_ref[...], basis_ref[...],
                preferred_element_type=jnp.float32)          # (2*tm, 2*fh)

    def epilogue(zz):
        xr, xi = zz[:tm, :fh], zz[:tm, fh:]
        yr, yi = zz[tm:, :fh], zz[tm:, fh:]

        x_pow = jnp.maximum(xr * xr + xi * xi, 1e-7)
        y_pow = jnp.maximum(yr * yr + yi * yi, 1e-7)

        # Phase first so xr/xi/yr/yi die early (limits f32 temp liveness in VMEM).
        dp = _atan2(xi, xr) - _atan2(yi, yr)
        phs_ref[...] = jnp.sum(dp * dp).reshape(1, 1, 1)

        x_mag = jnp.sqrt(x_pow)
        y_mag = jnp.sqrt(y_pow)
        dm = y_mag - x_mag
        sqd_ref[...] = jnp.sum(dm * dm).reshape(1, 1, 1)
        # Unmasked: padded rows/lanes contribute exactly 1e-7 each; the wrapper
        # subtracts that constant (mask removed = ~6 VPU ops/element saved).
        ysq_ref[...] = jnp.sum(y_pow).reshape(1, 1, 1)

        # |log y_mag - log x_mag| = 0.5 * |log(y_pow / x_pow)|: one log + approx recip.
        log_t = jnp.abs(jnp.log(y_pow * pl.reciprocal(x_pow, approx=True)))
        log_ref[...] = (0.5 * jnp.sum(log_t)).reshape(1, 1, 1)

    if n_k == 1:
        # Single k-step: feed the dot result straight to the epilogue, no accumulator.
        epilogue(z)
    else:
        @pl.when(k == 0)
        def _():
            acc_z[...] = z

        @pl.when(k != 0)
        def _():
            acc_z[...] += z

        @pl.when(k == n_k - 1)
        def _():
            epilogue(acc_z[...])


# --------------------------------------- wrappers ---------------------------------------

_VMEM_BUDGET = 42 * 2**20      # keep the working set comfortably under v7x's 64 MiB
_EPILOGUE_TEMPS = 10           # live (tm, fh) f32 intermediates during the loss epilogue


def _vmem_estimate(tm, tk, K, fh, in_bytes):
    frames = 2 * (2 * tm) * tk * in_bytes           # double-buffered stacked LHS block
    basis = 2 * tk * (2 * fh) * in_bytes            # double-buffered DFT-basis block
    acc = (2 * tm) * (2 * fh) * 4 if tk < K else 0  # persistent complex-spectrum scratch
    temps = _EPILOGUE_TEMPS * tm * fh * 4           # epilogue f32 temporaries
    return frames + basis + acc + temps + (1 << 20)


def _pick_tk(K, tm, fh, in_bytes):
    """Largest K-tile that fits the VMEM budget; full K preferred (basis stays resident)."""
    cands, c = [K], K // 2
    while c >= 128:
        if c % 128 == 0 and K % c == 0:
            cands.append(c)
        c //= 2
    for tk in cands:
        if _vmem_estimate(tm, tk, K, fh, in_bytes) <= _VMEM_BUDGET:
            return tk
    return cands[-1]


def stft_loss(x, y, fft_size, shift_size, win_length, *,
              tm=256, compute_dtype=jnp.bfloat16, force_tk=None):
    """Single-resolution STFTLoss.forward -> (sc_loss, mag_loss, phase_loss)."""
    x = jnp.asarray(x, jnp.float32)
    y = jnp.asarray(y, jnp.float32)
    B, T = x.shape
    K = fft_size
    n_freq = fft_size // 2 + 1
    fh = _round_up(n_freq, 128)               # lane-dense frequency width
    in_bytes = jnp.dtype(compute_dtype).itemsize

    basis = _stft_basis(fft_size, win_length, fh).astype(compute_dtype)   # (K, 2*fh)

    # Cast BEFORE framing so the hop-overlapped frame matrix is materialized in bf16
    # (halves the wrapper-side HBM traffic of the gather).
    xf = _frame(x.astype(compute_dtype), K, shift_size).reshape(-1, K)
    yf = _frame(y.astype(compute_dtype), K, shift_size).reshape(-1, K)
    M = xf.shape[0]                           # B * n_frames

    # Row tile: multiple of 128 when the workload can fill the MXU, never collapses.
    if M >= 128:
        tm_eff = min(tm, _round_up(M, 128))
    else:
        tm_eff = max(16, _round_up(M, 16))
    n_tiles = pl.cdiv(M, tm_eff)
    M_pad = n_tiles * tm_eff

    # Contraction tile.
    if force_tk is not None:
        assert K % force_tk == 0
        tk = force_tk
    else:
        tk = _pick_tk(K, tm_eff, fh, in_bytes)
    n_k = K // tk

    # Interleave x/y row tiles so each grid step gets one stacked (2*tm, tk) LHS block.
    def _pad_rows(f):
        return jnp.pad(f, ((0, M_pad - M), (0, 0)))
    frames = jnp.concatenate(
        [_pad_rows(xf).reshape(n_tiles, tm_eff, K),
         _pad_rows(yf).reshape(n_tiles, tm_eff, K)], axis=1,
    ).reshape(n_tiles * 2 * tm_eff, K)

    est = _vmem_estimate(tm_eff, tk, K, fh, in_bytes)
    vmem_limit = int(min(100 * 2**20, max(32 * 2**20, est + 24 * 2**20)))

    kernel = functools.partial(_stft_loss_kernel, tm=tm_eff, fh=fh, n_k=n_k)

    frames_spec = pl.BlockSpec((2 * tm_eff, tk), lambda i, k: (i, k))
    basis_spec = pl.BlockSpec((tk, 2 * fh), lambda i, k: (k, 0))
    out_spec = pl.BlockSpec((1, 1, 1), lambda i, k: (i, 0, 0))
    scalar_shape = jax.ShapeDtypeStruct((n_tiles, 1, 1), jnp.float32)
    acc_shape = (2 * tm_eff, 2 * fh) if n_k > 1 else (16, 128)   # dummy when unused

    outs = pl.pallas_call(
        kernel,
        out_shape=(scalar_shape, scalar_shape, scalar_shape, scalar_shape),
        grid_spec=pltpu.PrefetchScalarGridSpec(
            num_scalar_prefetch=0,
            grid=(n_tiles, n_k),
            in_specs=[frames_spec, basis_spec],
            out_specs=[out_spec, out_spec, out_spec, out_spec],
            scratch_shapes=[pltpu.VMEM(acc_shape, jnp.float32)],
        ),
        compiler_params=pltpu.CompilerParams(
            dimension_semantics=("parallel", "arbitrary"),
            vmem_limit_bytes=vmem_limit),
    )(frames, basis)

    logsum, sqdsum, ysqsum, phssum = (jnp.sum(o) for o in outs)
    n_elems = M * n_freq
    # Padded rows/lanes each contributed exactly clamp(0, 1e-7) = 1e-7 to ||Y||^2.
    pad_cells = M_pad * fh - n_elems
    ysqsum = jnp.maximum(ysqsum - pad_cells * 1e-7, 1e-12)
    sc_loss = jnp.sqrt(sqdsum) / jnp.sqrt(ysqsum)
    mag_loss = logsum / n_elems
    phase_loss = phssum / n_elems
    return sc_loss, mag_loss, phase_loss


def multi_resolution_stft_loss(x, y, fft_sizes, hop_sizes, win_lengths,
                               factor_sc=1.0, factor_mag=1.0, factor_phase=0.1, **kw):
    """MultiResolutionSTFTLoss.forward."""
    sc = mag = ph = 0.0
    for fs, ss, wl in zip(fft_sizes, hop_sizes, win_lengths):
        s, m, p = stft_loss(x, y, fs, ss, wl, **kw)
        sc, mag, ph = sc + s, mag + m, ph + p
    n = len(fft_sizes)
    return factor_sc * sc / n, factor_mag * mag / n, factor_phase * ph / n


def weighted_stft_loss_each_domain(out_spec, y_spec, out_wav, y_wav, tag="", *,
                                   fft_sizes=(4096, 2048, 1024, 512),
                                   hop_sizes=(1024, 512, 256, 128),
                                   win_lengths=(4096, 2048, 1024, 512),
                                   factor_sc=1.0, factor_mag=1.0, factor_phase=0.1,
                                   mse_weight=50.0, **kw):
    """WeightedSTFTLossEachDomain.forward -> (total_loss, loss_dict)."""
    loss_dict = {}
    if mse_weight > 0:
        # trivial elementwise reductions; left to XLA rather than a dedicated kernel
        mse_wav = jnp.mean((out_wav - y_wav) ** 2)
        mse_spec = jnp.mean((out_spec - y_spec) ** 2)
        loss_dict["mse_loss"] = (mse_wav + mse_spec) * 0.5 * mse_weight
    sc, mag, _phase = multi_resolution_stft_loss(
        out_wav, y_wav, fft_sizes, hop_sizes, win_lengths,
        factor_sc=factor_sc, factor_mag=factor_mag, factor_phase=factor_phase, **kw)
    if factor_sc > 0:
        loss_dict["sc_loss" + tag] = sc
    if factor_mag > 0:
        loss_dict["mag_loss" + tag] = mag
    # (phase loss is computed but, as in the torch module, not added to the total)
    total_loss = sum(loss_dict[k] for k in loss_dict)
    return total_loss, loss_dict


if __name__ == "__main__":
    key = jax.random.PRNGKey(0)
    k1, k2, k3, k4 = jax.random.split(key, 4)
    B, T = 2, 1024
    out_wav = 0.5 * jax.random.normal(k1, (B, T), dtype=jnp.float32)
    y_wav = 0.5 * jax.random.normal(k2, (B, T), dtype=jnp.float32)
    out_spec = jax.random.normal(k3, (B, 64, 32), dtype=jnp.float32)
    y_spec = jax.random.normal(k4, (B, 64, 32), dtype=jnp.float32)

    # Small resolutions (same fft/hop ratio as the module) to keep the demo tiny.
    total, loss_dict = weighted_stft_loss_each_domain(
        out_spec, y_spec, out_wav, y_wav,
        fft_sizes=(256, 128, 64), hop_sizes=(64, 32, 16), win_lengths=(256, 128, 64))
    jax.block_until_ready((total, loss_dict))
    assert bool(jnp.isfinite(total))

    # Smoke-test the K-tiled (multi k-step) accumulator path used by fft=4096.
    sc_a, mag_a, ph_a = stft_loss(out_wav, y_wav, 256, 64, 256)
    sc_b, mag_b, ph_b = stft_loss(out_wav, y_wav, 256, 64, 256, force_tk=128)
    jax.block_until_ready((sc_a, mag_a, ph_a, sc_b, mag_b, ph_b))
    assert bool(jnp.isfinite(sc_b) & jnp.isfinite(mag_b) & jnp.isfinite(ph_b))
    assert abs(float(sc_a) - float(sc_b)) <= 1e-3 * max(1.0, abs(float(sc_a)))
    assert abs(float(mag_a) - float(mag_b)) <= 1e-3 * max(1.0, abs(float(mag_a)))

    print("KERNEL_OK")
</pallas_src>

<mosaic_0001>
module attributes {stable_mosaic.version = 11 : i64} {
  func.func @_stft_loss_kernel(%arg0: i32, %arg1: i32, %arg2: memref<96x256xbf16, #tpu.memory_space<vmem>>, %arg3: memref<256x512xbf16, #tpu.memory_space<vmem>>, %arg4: memref<1x1x1xf32, #tpu.memory_space<vmem>>, %arg5: memref<1x1x1xf32, #tpu.memory_space<vmem>>, %arg6: memref<1x1x1xf32, #tpu.memory_space<vmem>>, %arg7: memref<1x1x1xf32, #tpu.memory_space<vmem>>, %arg8: memref<16x128xf32, #tpu.memory_space<vmem>>) attributes {dimension_semantics = [#tpu.dimension_semantics<parallel>, #tpu.dimension_semantics<arbitrary>], iteration_bounds = array<i64: 1, 1>, scalar_prefetch = 0 : i64, scratch_operands = 1 : i64, tpu.core_type = #tpu.core_type<tc>, window_params = [{transform_indices = @transform_0, window_bounds = array<i64: 96, 256>}, {transform_indices = @transform_1, window_bounds = array<i64: 256, 512>}, {transform_indices = @transform_2, window_bounds = array<i64: 1, 1, 1>}, {transform_indices = @transform_3, window_bounds = array<i64: 1, 1, 1>}, {transform_indices = @transform_4, window_bounds = array<i64: 1, 1, 1>}, {transform_indices = @transform_5, window_bounds = array<i64: 1, 1, 1>}]} {
    %c0 = arith.constant 0 : index
    %c0_0 = arith.constant 0 : index
    %0 = vector.load %arg2[%c0, %c0_0] : memref<96x256xbf16, #tpu.memory_space<vmem>>, vector<96x256xbf16>
    %c0_1 = arith.constant 0 : index
    %c0_2 = arith.constant 0 : index
    %1 = vector.load %arg3[%c0_1, %c0_2] : memref<256x512xbf16, #tpu.memory_space<vmem>>, vector<256x512xbf16>
    %cst = arith.constant dense<0.000000e+00> : vector<96x512xf32>
    %2 = tpu.matmul %0, %1, %cst {dimension_numbers = #tpu.dot_dimension_numbers<[1], [0], [0], [1], [0, 0, 1, 1], [], []>} : vector<96x256xbf16>, vector<256x512xbf16>, vector<96x512xf32> -> vector<96x512xf32>
    %3 = vector.extract_strided_slice %2 {offsets = [0, 0], sizes = [48, 256], strides = [1, 1]} : vector<96x512xf32> to vector<48x256xf32>
    %4 = vector.extract_strided_slice %2 {offsets = [0, 256], sizes = [48, 256], strides = [1, 1]} : vector<96x512xf32> to vector<48x256xf32>
    %5 = vector.extract_strided_slice %2 {offsets = [48, 0], sizes = [48, 256], strides = [1, 1]} : vector<96x512xf32> to vector<48x256xf32>
    %6 = vector.extract_strided_slice %2 {offsets = [48, 256], sizes = [48, 256], strides = [1, 1]} : vector<96x512xf32> to vector<48x256xf32>
    %7 = arith.mulf %3, %3 : vector<48x256xf32>
    %8 = arith.mulf %4, %4 : vector<48x256xf32>
    %9 = arith.addf %7, %8 : vector<48x256xf32>
    %cst_3 = arith.constant 1.000000e-07 : f32
    %10 = vector.broadcast %cst_3 : f32 to vector<48x256xf32>
    %11 = arith.maximumf %9, %10 : vector<48x256xf32>
    %12 = arith.mulf %5, %5 : vector<48x256xf32>
    %13 = arith.mulf %6, %6 : vector<48x256xf32>
    %14 = arith.addf %12, %13 : vector<48x256xf32>
    %cst_4 = arith.constant 1.000000e-07 : f32
    %15 = vector.broadcast %cst_4 : f32 to vector<48x256xf32>
    %16 = arith.maximumf %14, %15 : vector<48x256xf32>
    %17 = math.absf %3 : vector<48x256xf32>
    %18 = math.absf %4 : vector<48x256xf32>
    %19 = arith.maximumf %17, %18 : vector<48x256xf32>
    %20 = arith.minimumf %17, %18 : vector<48x256xf32>
    %cst_5 = arith.constant 1.000000e-30 : f32
    %21 = vector.broadcast %cst_5 : f32 to vector<48x256xf32>
    %22 = arith.maximumf %19, %21 : vector<48x256xf32>
    %23 = tpu.reciprocal %22 {approx = true} : vector<48x256xf32> -> vector<48x256xf32>
    %24 = arith.mulf %20, %23 : vector<48x256xf32>
    %cst_6 = arith.constant 0.414213568 : f32
    %25 = vector.broadcast %cst_6 : f32 to vector<48x256xf32>
    %26 = arith.cmpf ogt, %24, %25 : vector<48x256xf32>
    %cst_7 = arith.constant 1.000000e+00 : f32
    %27 = vector.broadcast %cst_7 : f32 to vector<48x256xf32>
    %28 = arith.subf %24, %27 : vector<48x256xf32>
    %cst_8 = arith.constant 1.000000e+00 : f32
    %29 = vector.broadcast %cst_8 : f32 to vector<48x256xf32>
    %30 = arith.addf %24, %29 : vector<48x256xf32>
    %31 = tpu.reciprocal %30 {approx = true} : vector<48x256xf32> -> vector<48x256xf32>
    %32 = arith.mulf %28, %31 : vector<48x256xf32>
    %33 = arith.select %26, %32, %24 : vector<48x256xi1>, vector<48x256xf32>
    %34 = arith.mulf %33, %33 : vector<48x256xf32>
    %cst_9 = arith.constant 0.0805374458 : f32
    %35 = vector.broadcast %cst_9 : f32 to vector<48x256xf32>
    %36 = arith.mulf %35, %34 : vector<48x256xf32>
    %cst_10 = arith.constant 0.138776854 : f32
    %37 = vector.broadcast %cst_10 : f32 to vector<48x256xf32>
    %38 = arith.subf %36, %37 : vector<48x256xf32>
    %39 = arith.mulf %38, %34 : vector<48x256xf32>
    %cst_11 = arith.constant 0.199777111 : f32
    %40 = vector.broadcast %cst_11 : f32 to vector<48x256xf32>
    %41 = arith.addf %39, %40 : vector<48x256xf32>
    %42 = arith.mulf %41, %34 : vector<48x256xf32>
    %cst_12 = arith.constant 0.333329499 : f32
    %43 = vector.broadcast %cst_12 : f32 to vector<48x256xf32>
    %44 = arith.subf %42, %43 : vector<48x256xf32>
    %45 = arith.mulf %44, %34 : vector<48x256xf32>
    %46 = arith.mulf %45, %33 : vector<48x256xf32>
    %47 = arith.addf %46, %33 : vector<48x256xf32>
    %cst_13 = arith.constant 0.785398185 : f32
    %cst_14 = arith.constant 0.000000e+00 : f32
    %48 = vector.broadcast %cst_13 : f32 to vector<48x256xf32>
    %49 = vector.broadcast %cst_14 : f32 to vector<48x256xf32>
    %50 = arith.select %26, %48, %49 : vector<48x256xi1>, vector<48x256xf32>
    %51 = arith.addf %47, %50 : vector<48x256xf32>
    %52 = arith.cmpf ogt, %18, %17 : vector<48x256xf32>
    %cst_15 = arith.constant 1.57079637 : f32
    %53 = vector.broadcast %cst_15 : f32 to vector<48x256xf32>
    %54 = arith.subf %53, %51 : vector<48x256xf32>
    %55 = arith.select %52, %54, %51 : vector<48x256xi1>, vector<48x256xf32>
    %cst_16 = arith.constant 0.000000e+00 : f32
    %56 = vector.broadcast %cst_16 : f32 to vector<48x256xf32>
    %57 = arith.cmpf olt, %3, %56 : vector<48x256xf32>
    %cst_17 = arith.constant 3.14159274 : f32
    %58 = vector.broadcast %cst_17 : f32 to vector<48x256xf32>
    %59 = arith.subf %58, %55 : vector<48x256xf32>
    %60 = arith.select %57, %59, %55 : vector<48x256xi1>, vector<48x256xf32>
    %cst_18 = arith.constant 0.000000e+00 : f32
    %61 = vector.broadcast %cst_18 : f32 to vector<48x256xf32>
    %62 = arith.cmpf olt, %4, %61 : vector<48x256xf32>
    %cst_19 = arith.constant 0.000000e+00 : f32
    %63 = vector.broadcast %cst_19 : f32 to vector<48x256xf32>
    %64 = arith.subf %63, %60 : vector<48x256xf32>
    %65 = arith.select %62, %64, %60 : vector<48x256xi1>, vector<48x256xf32>
    %66 = math.absf %5 : vector<48x256xf32>
    %67 = math.absf %6 : vector<48x256xf32>
    %68 = arith.maximumf %66, %67 : vector<48x256xf32>
    %69 = arith.minimumf %66, %67 : vector<48x256xf32>
    %cst_20 = arith.constant 1.000000e-30 : f32
    %70 = vector.broadcast %cst_20 : f32 to vector<48x256xf32>
    %71 = arith.maximumf %68, %70 : vector<48x256xf32>
    %72 = tpu.reciprocal %71 {approx = true} : vector<48x256xf32> -> vector<48x256xf32>
    %73 = arith.mulf %69, %72 : vector<48x256xf32>
    %cst_21 = arith.constant 0.414213568 : f32
    %74 = vector.broadcast %cst_21 : f32 to vector<48x256xf32>
    %75 = arith.cmpf ogt, %73, %74 : vector<48x256xf32>
    %cst_22 = arith.constant 1.000000e+00 : f32
    %76 = vector.broadcast %cst_22 : f32 to vector<48x256xf32>
    %77 = arith.subf %73, %76 : vector<48x256xf32>
    %cst_23 = arith.constant 1.000000e+00 : f32
    %78 = vector.broadcast %cst_23 : f32 to vector<48x256xf32>
    %79 = arith.addf %73, %78 : vector<48x256xf32>
    %80 = tpu.reciprocal %79 {approx = true} : vector<48x256xf32> -> vector<48x256xf32>
    %81 = arith.mulf %77, %80 : vector<48x256xf32>
    %82 = arith.select %75, %81, %73 : vector<48x256xi1>, vector<48x256xf32>
    %83 = arith.mulf %82, %82 : vector<48x256xf32>
    %cst_24 = arith.constant 0.0805374458 : f32
    %84 = vector.broadcast %cst_24 : f32 to vector<48x256xf32>
    %85 = arith.mulf %84, %83 : vector<48x256xf32>
    %cst_25 = arith.constant 0.138776854 : f32
    %86 = vector.broadcast %cst_25 : f32 to vector<48x256xf32>
    %87 = arith.subf %85, %86 : vector<48x256xf32>
    %88 = arith.mulf %87, %83 : vector<48x256xf32>
    %cst_26 = arith.constant 0.199777111 : f32
    %89 = vector.broadcast %cst_26 : f32 to vector<48x256xf32>
    %90 = arith.addf %88, %89 : vector<48x256xf32>
    %91 = arith.mulf %90, %83 : vector<48x256xf32>
    %cst_27 = arith.constant 0.333329499 : f32
    %92 = vector.broadcast %cst_27 : f32 to vector<48x256xf32>
    %93 = arith.subf %91, %92 : vector<48x256xf32>
    %94 = arith.mulf %93, %83 : vector<48x256xf32>
    %95 = arith.mulf %94, %82 : vector<48x256xf32>
    %96 = arith.addf %95, %82 : vector<48x256xf32>
    %cst_28 = arith.constant 0.785398185 : f32
    %cst_29 = arith.constant 0.000000e+00 : f32
    %97 = vector.broadcast %cst_28 : f32 to vector<48x256xf32>
    %98 = vector.broadcast %cst_29 : f32 to vector<48x256xf32>
    %99 = arith.select %75, %97, %98 : vector<48x256xi1>, vector<48x256xf32>
    %100 = arith.addf %96, %99 : vector<48x256xf32>
    %101 = arith.cmpf ogt, %67, %66 : vector<48x256xf32>
    %cst_30 = arith.constant 1.57079637 : f32
    %102 = vector.broadcast %cst_30 : f32 to vector<48x256xf32>
    %103 = arith.subf %102, %100 : vector<48x256xf32>
    %104 = arith.select %101, %103, %100 : vector<48x256xi1>, vector<48x256xf32>
    %cst_31 = arith.constant 0.000000e+00 : f32
    %105 = vector.broadcast %cst_31 : f32 to vector<48x256xf32>
    %106 = arith.cmpf olt, %5, %105 : vector<48x256xf32>
    %cst_32 = arith.constant 3.14159274 : f32
    %107 = vector.broadcast %cst_32 : f32 to vector<48x256xf32>
    %108 = arith.subf %107, %104 : vector<48x256xf32>
    %109 = arith.select %106, %108, %104 : vector<48x256xi1>, vector<48x256xf32>
    %cst_33 = arith.constant 0.000000e+00 : f32
    %110 = vector.broadcast %cst_33 : f32 to vector<48x256xf32>
    %111 = arith.cmpf olt, %6, %110 : vector<48x256xf32>
    %cst_34 = arith.constant 0.000000e+00 : f32
    %112 = vector.broadcast %cst_34 : f32 to vector<48x256xf32>
    %113 = arith.subf %112, %109 : vector<48x256xf32>
    %114 = arith.select %111, %113, %109 : vector<48x256xi1>, vector<48x256xf32>
    %115 = arith.subf %65, %114 : vector<48x256xf32>
    %116 = arith.mulf %115, %115 : vector<48x256xf32>
    %117 = vector.shape_cast %116 : vector<48x256xf32> to vector<1x48x256xf32>
    %cst_35 = arith.constant dense<0.000000e+00> : vector<1xf32>
    %118 = vector.multi_reduction <add>, %117, %cst_35 [1, 2] : vector<1x48x256xf32> to vector<1xf32>
    %119 = vector.shape_cast %118 : vector<1xf32> to vector<1x1x1xf32>
    %120 = vector.extract %119[0, 0, 0] : f32 from vector<1x1x1xf32>
    %121 = vector.broadcast %120 : f32 to vector<1x1x1xf32>
    %c0_36 = arith.constant 0 : index
    %c0_37 = arith.constant 0 : index
    %c0_38 = arith.constant 0 : index
    %122 = vector.load %arg7[%c0_36, %c0_37, %c0_38] : memref<1x1x1xf32, #tpu.memory_space<vmem>>, vector<1x1x1xf32>
    tpu.vector_store %arg7[%c0_36, %c0_37, %c0_38], %121 {strides = array<i32>} : memref<1x1x1xf32, #tpu.memory_space<vmem>>, vector<1x1x1xf32>,
    %123 = math.sqrt %11 : vector<48x256xf32>
    %124 = math.sqrt %16 : vector<48x256xf32>
    %125 = arith.subf %124, %123 : vector<48x256xf32>
    %126 = arith.mulf %125, %125 : vector<48x256xf32>
    %127 = vector.shape_cast %126 : vector<48x256xf32> to vector<1x48x256xf32>
    %cst_39 = arith.constant dense<0.000000e+00> : vector<1xf32>
    %128 = vector.multi_reduction <add>, %127, %cst_39 [1, 2] : vector<1x48x256xf32> to vector<1xf32>
    %129 = vector.shape_cast %128 : vector<1xf32> to vector<1x1x1xf32>
    %130 = vector.extract %129[0, 0, 0] : f32 from vector<1x1x1xf32>
    %131 = vector.broadcast %130 : f32 to vector<1x1x1xf32>
    %c0_40 = arith.constant 0 : index
    %c0_41 = arith.constant 0 : index
    %c0_42 = arith.constant 0 : index
    %132 = vector.load %arg5[%c0_40, %c0_41, %c0_42] : memref<1x1x1xf32, #tpu.memory_space<vmem>>, vector<1x1x1xf32>
    tpu.vector_store %arg5[%c0_40, %c0_41, %c0_42], %131 {strides = array<i32>} : memref<1x1x1xf32, #tpu.memory_space<vmem>>, vector<1x1x1xf32>,
    %133 = vector.shape_cast %16 : vector<48x256xf32> to vector<1x48x256xf32>
    %cst_43 = arith.constant dense<0.000000e+00> : vector<1xf32>
    %134 = vector.multi_reduction <add>, %133, %cst_43 [1, 2] : vector<1x48x256xf32> to vector<1xf32>
    %135 = vector.shape_cast %134 : vector<1xf32> to vector<1x1x1xf32>
    %136 = vector.extract %135[0, 0, 0] : f32 from vector<1x1x1xf32>
    %137 = vector.broadcast %136 : f32 to vector<1x1x1xf32>
    %c0_44 = arith.constant 0 : index
    %c0_45 = arith.constant 0 : index
    %c0_46 = arith.constant 0 : index
    %138 = vector.load %arg6[%c0_44, %c0_45, %c0_46] : memref<1x1x1xf32, #tpu.memory_space<vmem>>, vector<1x1x1xf32>
    tpu.vector_store %arg6[%c0_44, %c0_45, %c0_46], %137 {strides = array<i32>} : memref<1x1x1xf32, #tpu.memory_space<vmem>>, vector<1x1x1xf32>,
    %139 = tpu.reciprocal %11 {approx = true} : vector<48x256xf32> -> vector<48x256xf32>
    %140 = arith.mulf %16, %139 : vector<48x256xf32>
    %141 = math.log %140 : vector<48x256xf32>
    %142 = math.absf %141 : vector<48x256xf32>
    %143 = vector.shape_cast %142 : vector<48x256xf32> to vector<1x48x256xf32>
    %cst_47 = arith.constant dense<0.000000e+00> : vector<1xf32>
    %144 = vector.multi_reduction <add>, %143, %cst_47 [1, 2] : vector<1x48x256xf32> to vector<1xf32>
    %145 = vector.shape_cast %144 : vector<1xf32> to vector<1x1x1xf32>
    %146 = vector.extract %145[0, 0, 0] : f32 from vector<1x1x1xf32>
    %cst_48 = arith.constant 5.000000e-01 : f32
    %147 = arith.mulf %cst_48, %146 : f32
    %148 = vector.broadcast %147 : f32 to vector<1x1x1xf32>
    %c0_49 = arith.constant 0 : index
    %c0_50 = arith.constant 0 : index
    %c0_51 = arith.constant 0 : index
    %149 = vector.load %arg4[%c0_49, %c0_50, %c0_51] : memref<1x1x1xf32, #tpu.memory_space<vmem>>, vector<1x1x1xf32>
    tpu.vector_store %arg4[%c0_49, %c0_50, %c0_51], %148 {strides = array<i32>} : memref<1x1x1xf32, #tpu.memory_space<vmem>>, vector<1x1x1xf32>,
    return
  }
  func.func @transform_0(%arg0: i32, %arg1: i32) -> (i32, i32) {
    %c0_i32 = arith.constant 0 : i32
    return %arg0, %arg1 : i32, i32
  }
  func.func @transform_1(%arg0: i32, %arg1: i32) -> (i32, i32) {
    %c0_i32 = arith.constant 0 : i32
    %c0_i32_0 = arith.constant 0 : i32
    return %arg1, %c0_i32 : i32, i32
  }
  func.func @transform_2(%arg0: i32, %arg1: i32) -> (i32, i32, i32) {
    %c0_i32 = arith.constant 0 : i32
    %c0_i32_0 = arith.constant 0 : i32
    %c0_i32_1 = arith.constant 0 : i32
    return %arg0, %c0_i32, %c0_i32_0 : i32, i32, i32
  }
  func.func @transform_3(%arg0: i32, %arg1: i32) -> (i32, i32, i32) {
    %c0_i32 = arith.constant 0 : i32
    %c0_i32_0 = arith.constant 0 : i32
    %c0_i32_1 = arith.constant 0 : i32
    return %arg0, %c0_i32, %c0_i32_0 : i32, i32, i32
  }
  func.func @transform_4(%arg0: i32, %arg1: i32) -> (i32, i32, i32) {
    %c0_i32 = arith.constant 0 : i32
    %c0_i32_0 = arith.constant 0 : i32
    %c0_i32_1 = arith.constant 0 : i32
    return %arg0, %c0_i32, %c0_i32_0 : i32, i32, i32
  }
  func.func @transform_5(%arg0: i32, %arg1: i32) -> (i32, i32, i32) {
    %c0_i32 = arith.constant 0 : i32
    %c0_i32_0 = arith.constant 0 : i32
    %c0_i32_1 = arith.constant 0 : i32
    return %arg0, %c0_i32, %c0_i32_0 : i32, i32, i32
  }
}

</mosaic_0001>

<llo_original>
// kernel: tpu_custom_call.1
$region0: #{tpu_custom_call.1}
  #allocation0 [shape = 'u32[]', space=smem, size = 0x4, offset = 0x4, fixed_abs, tag = 'smem constant byte address 0x4 - core index']
  #allocation1 [shape = 'u32[144,128]{1,0:T(1,128)}', space=vmem, size = 0x12000, scoped, tag = 'internal scratch']
  #allocation2 [shape = 'f32[16,128]{1,0:T(8,128)}', space=vmem, size = 0x2000, scoped, tag = 'scratch operand']
  %s0 = inlined_call_operand.hbm [shape: bf16[96,256], index: 0, kind: input, shape index: {}]
  %s1 = inlined_call_operand.hbm [shape: bf16[256,512], index: 1, kind: input, shape index: {}]
  %s2 = inlined_call_operand.hbm [shape: f32[1,1,1], index: 2, kind: output, shape index: {0}]
  %s3 = inlined_call_operand.hbm [shape: f32[1,1,1], index: 3, kind: output, shape index: {1}]
  %s4 = inlined_call_operand.hbm [shape: f32[1,1,1], index: 4, kind: output, shape index: {2}]
  %s5 = inlined_call_operand.hbm [shape: f32[1,1,1], index: 5, kind: output, shape index: {3}]
  %6 = xla_tuple %s2, %s3, %s4, %s5
  %s7 = sld [smem:[#allocation0]]
  $region50: #{tpu_custom_call.1} parent=0
    _
  %s9 = ssub.s32 1, %s7
  %s10 = scalar_select 0, %s9, %s7
  $region1: #{tpu_custom_call.1} parent=0
    #allocation3 [shape = 'u8[49152]{0}', space=vmem, size = 0xc000, scoped, tag = 'input window, operand 0, single buffered']
    #allocation4 [shape = 's32[1]{0}', space=sflag, size = 0x4, scoped, tag = 'scoped memory for tpu_custom_call.1']
    #allocation5 [shape = 's32[1]{0}', space=sflag, size = 0x4, scoped, tag = 'scoped memory for tpu_custom_call.1']
    #allocation6 [shape = 'u8[262144]{0}', space=vmem, size = 0x40000, scoped, tag = 'input window, operand 1, single buffered']
    #allocation7 [shape = 's32[1]{0}', space=sflag, size = 0x4, scoped, tag = 'scoped memory for tpu_custom_call.1']
    #allocation8 [shape = 'u8[512]{0}', space=vmem, size = 0x400, scoped, tag = 'output window, operand 0, single buffered']
    #allocation9 [shape = 'u8[512]{0}', space=vmem, size = 0x400, scoped, tag = 'output window, operand 1, single buffered']
    #allocation10 [shape = 's32[1]{0}', space=sflag, size = 0x4, scoped, tag = 'scoped memory for tpu_custom_call.1']
    #allocation11 [shape = 'u8[512]{0}', space=vmem, size = 0x400, scoped, tag = 'output window, operand 2, single buffered']
    #allocation12 [shape = 'u8[512]{0}', space=vmem, size = 0x400, scoped, tag = 'output window, operand 3, single buffered']
    #allocation13 [shape = 's32[1]{0}', space=sflag, size = 0x4, scoped, tag = 'scoped memory for tpu_custom_call.1']
    %11 = vsyncpa [#allocation4], 0
    %12 = vsyncpa [#allocation7], 0
    %13 = vsyncpa [#allocation5], 0
    %14 = vsyncpa [#allocation10], 0
    %15 = vsyncpa [#allocation13], 0
    // Predicated region
    $region2: #{tpu_custom_call.1} parent=1 // pred_check
      _
    $region3: #{tpu_custom_call.1} parent=1 // pred_check_branch
      %17 = sbr.rel (0) target = $region5
    $region4: #{tpu_custom_call.1} parent=1 // pred_region
      %s19 = ssub.s32 1536, 1536
      %20 = vsyncadd [#allocation4], %s19
      %s21 = sshll.u32 [#allocation3], 4
      %s22 = int_to_ptr.vmem [resolvable:$true] %s21
      %27 = dma.hbm_to_vmem [thread:$0]  %s0, 1536, %s22, [#allocation4], 128, 128, 8
    $region5: #{tpu_custom_call.1} parent=1 // pred_fallthru
      _
    // Predicated region
    $region6: #{tpu_custom_call.1} parent=1 // pred_check
      _
    $region7: #{tpu_custom_call.1} parent=1 // pred_check_branch
      %29 = sbr.rel (0) target = $region9
    $region8: #{tpu_custom_call.1} parent=1 // pred_region
      %s31 = ssub.s32 8192, 8192
      %32 = vsyncadd [#allocation7], %s31
      %s33 = sshll.u32 [#allocation6], 4
      %s34 = int_to_ptr.vmem [resolvable:$true] %s33
      %39 = dma.hbm_to_vmem [thread:$0]  %s1, 8192, %s34, [#allocation7], 256, 256, 16
    $region9: #{tpu_custom_call.1} parent=1 // pred_fallthru
      _
    // Predicated region
    $region10: #{tpu_custom_call.1} parent=1 // pred_check
      _
    $region11: #{tpu_custom_call.1} parent=1 // pred_check_branch
      %41 = sbr.rel (0) target = $region13
    $region12: #{tpu_custom_call.1} parent=1 // pred_region
      %42 = dma.done [#allocation4], 1536
    $region13: #{tpu_custom_call.1} parent=1 // pred_fallthru
      _
    // Predicated region
    $region14: #{tpu_custom_call.1} parent=1 // pred_check
      _
    $region15: #{tpu_custom_call.1} parent=1 // pred_check_branch
      %44 = sbr.rel (0) target = $region17
    $region16: #{tpu_custom_call.1} parent=1 // pred_region
      %45 = dma.done [#allocation7], 8192
    $region17: #{tpu_custom_call.1} parent=1 // pred_fallthru
      _
    %v46 = vld [vmem:[#allocation3] sm:$0xff]
    %v47 = vld [vmem:[#allocation3 + $0x8] sm:$0xff]
    %v48 = vld [vmem:[#allocation3 + $0x10] sm:$0xff]
    %v49 = vld [vmem:[#allocation3 + $0x18] sm:$0xff]
    %v50 = vld [vmem:[#allocation3 + $0x20] sm:$0xff]
    %v51 = vld [vmem:[#allocation3 + $0x28] sm:$0xff]
    %v52 = vld [vmem:[#allocation3 + $0x30] sm:$0xff]
    %v53 = vld [vmem:[#allocation3 + $0x38] sm:$0xff]
    %v54 = vld [vmem:[#allocation3 + $0x40] sm:$0xff]
    %v55 = vld [vmem:[#allocation3 + $0x48] sm:$0xff]
    %v56 = vld [vmem:[#allocation3 + $0x50] sm:$0xff]
    %v57 = vld [vmem:[#allocation3 + $0x58] sm:$0xff]
    %v58 = vld [vmem:[#allocation6] sm:$0xff]
    %v59 = vld [vmem:[#allocation6 + $0x8] sm:$0xff]
    %v60 = vld [vmem:[#allocation6 + $0x10] sm:$0xff]
    %v61 = vld [vmem:[#allocation6 + $0x18] sm:$0xff]
    %v62 = vld [vmem:[#allocation6 + $0x20] sm:$0xff]
    %v63 = vld [vmem:[#allocation6 + $0x28] sm:$0xff]
    %v64 = vld [vmem:[#allocation6 + $0x30] sm:$0xff]
    %v65 = vld [vmem:[#allocation6 + $0x38] sm:$0xff]
    %v66 = vld [vmem:[#allocation6 + $0x40] sm:$0xff]
    %v67 = vld [vmem:[#allocation6 + $0x48] sm:$0xff]
    %v68 = vld [vmem:[#allocation6 + $0x50] sm:$0xff]
    %v69 = vld [vmem:[#allocation6 + $0x58] sm:$0xff]
    %v70 = vld [vmem:[#allocation6 + $0x60] sm:$0xff]
    %v71 = vld [vmem:[#allocation6 + $0x68] sm:$0xff]
    %v72 = vld [vmem:[#allocation6 + $0x70] sm:$0xff]
    %v73 = vld [vmem:[#allocation6 + $0x78] sm:$0xff]
    %v74 = vld [vmem:[#allocation6 + $0x80] sm:$0xff]
    %v75 = vld [vmem:[#allocation6 + $0x88] sm:$0xff]
    %v76 = vld [vmem:[#allocation6 + $0x90] sm:$0xff]
    %v77 = vld [vmem:[#allocation6 + $0x98] sm:$0xff]
    %v78 = vld [vmem:[#allocation6 + $0xa0] sm:$0xff]
    %v79 = vld [vmem:[#allocation6 + $0xa8] sm:$0xff]
    %v80 = vld [vmem:[#allocation6 + $0xb0] sm:$0xff]
    %v81 = vld [vmem:[#allocation6 + $0xb8] sm:$0xff]
    %v82 = vld [vmem:[#allocation6 + $0xc0] sm:$0xff]
    %v83 = vld [vmem:[#allocation6 + $0xc8] sm:$0xff]
    %v84 = vld [vmem:[#allocation6 + $0xd0] sm:$0xff]
    %v85 = vld [vmem:[#allocation6 + $0xd8] sm:$0xff]
    %v86 = vld [vmem:[#allocation6 + $0xe0] sm:$0xff]
    %v87 = vld [vmem:[#allocation6 + $0xe8] sm:$0xff]
    %v88 = vld [vmem:[#allocation6 + $0xf0] sm:$0xff]
    %v89 = vld [vmem:[#allocation6 + $0xf8] sm:$0xff]
    %v90 = vld [vmem:[#allocation6 + $0x100] sm:$0xff]
    %v91 = vld [vmem:[#allocation6 + $0x108] sm:$0xff]
    %v92 = vld [vmem:[#allocation6 + $0x110] sm:$0xff]
    %v93 = vld [vmem:[#allocation6 + $0x118] sm:$0xff]
    %v94 = vld [vmem:[#allocation6 + $0x120] sm:$0xff]
    %v95 = vld [vmem:[#allocation6 + $0x128] sm:$0xff]
    %v96 = vld [vmem:[#allocation6 + $0x130] sm:$0xff]
    %v97 = vld [vmem:[#allocation6 + $0x138] sm:$0xff]
    %v98 = vld [vmem:[#allocation6 + $0x140] sm:$0xff]
    %v99 = vld [vmem:[#allocation6 + $0x148] sm:$0xff]
    %v100 = vld [vmem:[#allocation6 + $0x150] sm:$0xff]
    %v101 = vld [vmem:[#allocation6 + $0x158] sm:$0xff]
    %v102 = vld [vmem:[#allocation6 + $0x160] sm:$0xff]
    %v103 = vld [vmem:[#allocation6 + $0x168] sm:$0xff]
    %v104 = vld [vmem:[#allocation6 + $0x170] sm:$0xff]
    %v105 = vld [vmem:[#allocation6 + $0x178] sm:$0xff]
    %v106 = vld [vmem:[#allocation6 + $0x180] sm:$0xff]
    %v107 = vld [vmem:[#allocation6 + $0x188] sm:$0xff]
    %v108 = vld [vmem:[#allocation6 + $0x190] sm:$0xff]
    %v109 = vld [vmem:[#allocation6 + $0x198] sm:$0xff]
    %v110 = vld [vmem:[#allocation6 + $0x1a0] sm:$0xff]
    %v111 = vld [vmem:[#allocation6 + $0x1a8] sm:$0xff]
    %v112 = vld [vmem:[#allocation6 + $0x1b0] sm:$0xff]
    %v113 = vld [vmem:[#allocation6 + $0x1b8] sm:$0xff]
    %v114 = vld [vmem:[#allocation6 + $0x1c0] sm:$0xff]
    %v115 = vld [vmem:[#allocation6 + $0x1c8] sm:$0xff]
    %v116 = vld [vmem:[#allocation6 + $0x1d0] sm:$0xff]
    %v117 = vld [vmem:[#allocation6 + $0x1d8] sm:$0xff]
    %v118 = vld [vmem:[#allocation6 + $0x1e0] sm:$0xff]
    %v119 = vld [vmem:[#allocation6 + $0x1e8] sm:$0xff]
    %v120 = vld [vmem:[#allocation6 + $0x1f0] sm:$0xff]
    %v121 = vld [vmem:[#allocation6 + $0x1f8] sm:$0xff]
    %v134 = vunpack.c.l.b16 %v46
    %v135 = vunpack.c.h.b16 %v46
    %v136 = vunpack.c.l.b16 %v47
    %v137 = vunpack.c.h.b16 %v47
    %v138 = vunpack.c.l.b16 %v48
    %v139 = vunpack.c.h.b16 %v48
    %v140 = vunpack.c.l.b16 %v49
    %v141 = vunpack.c.h.b16 %v49
    %v142 = vunpack.c.l.b16 %v50
    %v143 = vunpack.c.h.b16 %v50
    %v144 = vunpack.c.l.b16 %v51
    %v145 = vunpack.c.h.b16 %v51
    %v146 = vunpack.c.l.b16 %v52
    %v147 = vunpack.c.h.b16 %v52
    %v148 = vunpack.c.l.b16 %v53
    %v149 = vunpack.c.h.b16 %v53
    %v150 = vunpack.c.l.b16 %v54
    %v151 = vunpack.c.h.b16 %v54
    %v152 = vunpack.c.l.b16 %v55
    %v153 = vunpack.c.h.b16 %v55
    %v154 = vunpack.c.l.b16 %v56
    %v155 = vunpack.c.h.b16 %v56
    %v156 = vunpack.c.l.b16 %v57
    %v157 = vunpack.c.h.b16 %v57
    %v158 = vpack.c.b16 %v136, %v134
    %v159 = vpack.c.b16 %v137, %v135
    %v160 = vpack.c.b16 %v140, %v138
    %v161 = vpack.c.b16 %v141, %v139
    %v162 = vpack.c.b16 %v144, %v142
    %v163 = vpack.c.b16 %v145, %v143
    %v164 = vpack.c.b16 %v148, %v146
    %v165 = vpack.c.b16 %v149, %v147
    %v166 = vpack.c.b16 %v152, %v150
    %v167 = vpack.c.b16 %v153, %v151
    %v168 = vpack.c.b16 %v156, %v154
    %v169 = vpack.c.b16 %v157, %v155
    %v246 = vunpack.c.l.b16 %v58
    %v247 = vunpack.c.h.b16 %v58
    %v248 = vunpack.c.l.b16 %v59
    %v249 = vunpack.c.h.b16 %v59
    %v250 = vunpack.c.l.b16 %v60
    %v251 = vunpack.c.h.b16 %v60
    %v252 = vunpack.c.l.b16 %v61
    %v253 = vunpack.c.h.b16 %v61
    %v254 = vunpack.c.l.b16 %v62
    %v255 = vunpack.c.h.b16 %v62
    %v256 = vunpack.c.l.b16 %v63
    %v257 = vunpack.c.h.b16 %v63
    %v258 = vunpack.c.l.b16 %v64
    %v259 = vunpack.c.h.b16 %v64
    %v260 = vunpack.c.l.b16 %v65
    %v261 = vunpack.c.h.b16 %v65
    %v262 = vunpack.c.l.b16 %v66
    %v263 = vunpack.c.h.b16 %v66
    %v264 = vunpack.c.l.b16 %v67
    %v265 = vunpack.c.h.b16 %v67
    %v266 = vunpack.c.l.b16 %v68
    %v267 = vunpack.c.h.b16 %v68
    %v268 = vunpack.c.l.b16 %v69
    %v269 = vunpack.c.h.b16 %v69
    %v270 = vunpack.c.l.b16 %v70
    %v271 = vunpack.c.h.b16 %v70
    %v272 = vunpack.c.l.b16 %v71
    %v273 = vunpack.c.h.b16 %v71
    %v274 = vunpack.c.l.b16 %v72
    %v275 = vunpack.c.h.b16 %v72
    %v276 = vunpack.c.l.b16 %v73
    %v277 = vunpack.c.h.b16 %v73
    %v278 = vunpack.c.l.b16 %v74
    %v279 = vunpack.c.h.b16 %v74
    %v280 = vunpack.c.l.b16 %v75
    %v281 = vunpack.c.h.b16 %v75
    %v282 = vunpack.c.l.b16 %v76
    %v283 = vunpack.c.h.b16 %v76
    %v284 = vunpack.c.l.b16 %v77
    %v285 = vunpack.c.h.b16 %v77
    %v286 = vunpack.c.l.b16 %v78
    %v287 = vunpack.c.h.b16 %v78
    %v288 = vunpack.c.l.b16 %v79
    %v289 = vunpack.c.h.b16 %v79
    %v290 = vunpack.c.l.b16 %v80
    %v291 = vunpack.c.h.b16 %v80
    %v292 = vunpack.c.l.b16 %v81
    %v293 = vunpack.c.h.b16 %v81
    %v294 = vunpack.c.l.b16 %v82
    %v295 = vunpack.c.h.b16 %v82
    %v296 = vunpack.c.l.b16 %v83
    %v297 = vunpack.c.h.b16 %v83
    %v298 = vunpack.c.l.b16 %v84
    %v299 = vunpack.c.h.b16 %v84
    %v300 = vunpack.c.l.b16 %v85
    %v301 = vunpack.c.h.b16 %v85
    %v302 = vunpack.c.l.b16 %v86
    %v303 = vunpack.c.h.b16 %v86
    %v304 = vunpack.c.l.b16 %v87
    %v305 = vunpack.c.h.b16 %v87
    %v306 = vunpack.c.l.b16 %v88
    %v307 = vunpack.c.h.b16 %v88
    %v308 = vunpack.c.l.b16 %v89
    %v309 = vunpack.c.h.b16 %v89
    %v310 = vunpack.c.l.b16 %v90
    %v311 = vunpack.c.h.b16 %v90
    %v312 = vunpack.c.l.b16 %v91
    %v313 = vunpack.c.h.b16 %v91
    %v314 = vunpack.c.l.b16 %v92
    %v315 = vunpack.c.h.b16 %v92
    %v316 = vunpack.c.l.b16 %v93
    %v317 = vunpack.c.h.b16 %v93
    %v318 = vunpack.c.l.b16 %v94
    %v319 = vunpack.c.h.b16 %v94
    %v320 = vunpack.c.l.b16 %v95
    %v321 = vunpack.c.h.b16 %v95
    %v322 = vunpack.c.l.b16 %v96
    %v323 = vunpack.c.h.b16 %v96
    %v324 = vunpack.c.l.b16 %v97
    %v325 = vunpack.c.h.b16 %v97
    %v326 = vunpack.c.l.b16 %v98
    %v327 = vunpack.c.h.b16 %v98
    %v328 = vunpack.c.l.b16 %v99
    %v329 = vunpack.c.h.b16 %v99
    %v330 = vunpack.c.l.b16 %v100
    %v331 = vunpack.c.h.b16 %v100
    %v332 = vunpack.c.l.b16 %v101
    %v333 = vunpack.c.h.b16 %v101
    %v334 = vunpack.c.l.b16 %v102
    %v335 = vunpack.c.h.b16 %v102
    %v336 = vunpack.c.l.b16 %v103
    %v337 = vunpack.c.h.b16 %v103
    %v338 = vunpack.c.l.b16 %v104
    %v339 = vunpack.c.h.b16 %v104
    %v340 = vunpack.c.l.b16 %v105
    %v341 = vunpack.c.h.b16 %v105
    %v342 = vunpack.c.l.b16 %v106
    %v343 = vunpack.c.h.b16 %v106
    %v344 = vunpack.c.l.b16 %v107
    %v345 = vunpack.c.h.b16 %v107
    %v346 = vunpack.c.l.b16 %v108
    %v347 = vunpack.c.h.b16 %v108
    %v348 = vunpack.c.l.b16 %v109
    %v349 = vunpack.c.h.b16 %v109
    %v350 = vunpack.c.l.b16 %v110
    %v351 = vunpack.c.h.b16 %v110
    %v352 = vunpack.c.l.b16 %v111
    %v353 = vunpack.c.h.b16 %v111
    %v354 = vunpack.c.l.b16 %v112
    %v355 = vunpack.c.h.b16 %v112
    %v356 = vunpack.c.l.b16 %v113
    %v357 = vunpack.c.h.b16 %v113
    %v358 = vunpack.c.l.b16 %v114
    %v359 = vunpack.c.h.b16 %v114
    %v360 = vunpack.c.l.b16 %v115
    %v361 = vunpack.c.h.b16 %v115
    %v362 = vunpack.c.l.b16 %v116
    %v363 = vunpack.c.h.b16 %v116
    %v364 = vunpack.c.l.b16 %v117
    %v365 = vunpack.c.h.b16 %v117
    %v366 = vunpack.c.l.b16 %v118
    %v367 = vunpack.c.h.b16 %v118
    %v368 = vunpack.c.l.b16 %v119
    %v369 = vunpack.c.h.b16 %v119
    %v370 = vunpack.c.l.b16 %v120
    %v371 = vunpack.c.h.b16 %v120
    %v372 = vunpack.c.l.b16 %v121
    %v373 = vunpack.c.h.b16 %v121
    %v374 = vpack.c.b16 %v250, %v246
    %v375 = vpack.c.b16 %v251, %v247
    %v376 = vpack.c.b16 %v252, %v248
    %v377 = vpack.c.b16 %v253, %v249
    %v378 = vpack.c.b16 %v258, %v254
    %v379 = vpack.c.b16 %v259, %v255
    %v380 = vpack.c.b16 %v260, %v256
    %v381 = vpack.c.b16 %v261, %v257
    %v382 = vpack.c.b16 %v266, %v262
    %v383 = vpack.c.b16 %v267, %v263
    %v384 = vpack.c.b16 %v268, %v264
    %v385 = vpack.c.b16 %v269, %v265
    %v386 = vpack.c.b16 %v274, %v270
    %v387 = vpack.c.b16 %v275, %v271
    %v388 = vpack.c.b16 %v276, %v272
    %v389 = vpack.c.b16 %v277, %v273
    %v390 = vpack.c.b16 %v282, %v278
    %v391 = vpack.c.b16 %v283, %v279
    %v392 = vpack.c.b16 %v284, %v280
    %v393 = vpack.c.b16 %v285, %v281
    %v394 = vpack.c.b16 %v290, %v286
    %v395 = vpack.c.b16 %v291, %v287
    %v396 = vpack.c.b16 %v292, %v288
    %v397 = vpack.c.b16 %v293, %v289
    %v398 = vpack.c.b16 %v298, %v294
    %v399 = vpack.c.b16 %v299, %v295
    %v400 = vpack.c.b16 %v300, %v296
    %v401 = vpack.c.b16 %v301, %v297
    %v402 = vpack.c.b16 %v306, %v302
    %v403 = vpack.c.b16 %v307, %v303
    %v404 = vpack.c.b16 %v308, %v304
    %v405 = vpack.c.b16 %v309, %v305
    %v406 = vpack.c.b16 %v314, %v310
    %v407 = vpack.c.b16 %v315, %v311
    %v408 = vpack.c.b16 %v316, %v312
    %v409 = vpack.c.b16 %v317, %v313
    %v410 = vpack.c.b16 %v322, %v318
    %v411 = vpack.c.b16 %v323, %v319
    %v412 = vpack.c.b16 %v324, %v320
    %v413 = vpack.c.b16 %v325, %v321
    %v414 = vpack.c.b16 %v330, %v326
    %v415 = vpack.c.b16 %v331, %v327
    %v416 = vpack.c.b16 %v332, %v328
    %v417 = vpack.c.b16 %v333, %v329
    %v418 = vpack.c.b16 %v338, %v334
    %v419 = vpack.c.b16 %v339, %v335
    %v420 = vpack.c.b16 %v340, %v336
    %v421 = vpack.c.b16 %v341, %v337
    %v422 = vpack.c.b16 %v346, %v342
    %v423 = vpack.c.b16 %v347, %v343
    %v424 = vpack.c.b16 %v348, %v344
    %v425 = vpack.c.b16 %v349, %v345
    %v426 = vpack.c.b16 %v354, %v350
    %v427 = vpack.c.b16 %v355, %v351
    %v428 = vpack.c.b16 %v356, %v352
    %v429 = vpack.c.b16 %v357, %v353
    %v430 = vpack.c.b16 %v362, %v358
    %v431 = vpack.c.b16 %v363, %v359
    %v432 = vpack.c.b16 %v364, %v360
    %v433 = vpack.c.b16 %v365, %v361
    %v434 = vpack.c.b16 %v370, %v366
    %v435 = vpack.c.b16 %v371, %v367
    %v436 = vpack.c.b16 %v372, %v368
    %v437 = vpack.c.b16 %v373, %v369
    %502 = vmatprep.subr.bf16.mxu0 %v375
    %503 = vmatpush1.bf16.msra.mxu0 %v374
    %504 = vmatprep.subr.bf16.mxu0 %v379
    %505 = vmatpush1.bf16.msra.mxu0 %v378
    %506 = vmatprep.subr.bf16.mxu0 %v383
    %507 = vmatpush1.bf16.msra.mxu0 %v382
    %508 = vmatprep.subr.bf16.mxu0 %v387
    %509 = vmatpush1.bf16.msra.mxu0 %v386
    %510 = vmatprep.subr.bf16.mxu0 %v391
    %511 = vmatpush1.bf16.msra.mxu0 %v390
    %512 = vmatprep.subr.bf16.mxu0 %v395
    %513 = vmatpush1.bf16.msra.mxu0 %v394
    %514 = vmatprep.subr.bf16.mxu0 %v399
    %515 = vmatpush1.bf16.msra.mxu0 %v398
    %516 = vmatprep.subr.bf16.mxu0 %v403
    %517 = vmatpush1.bf16.msra.mxu0 %v402
    %518 = vmatprep.subr.bf16.mxu0 %v407
    %519 = vmatpush1.bf16.msra.mxu0 %v406
    %520 = vmatprep.subr.bf16.mxu0 %v411
    %521 = vmatpush1.bf16.msra.mxu0 %v410
    %522 = vmatprep.subr.bf16.mxu0 %v415
    %523 = vmatpush1.bf16.msra.mxu0 %v414
    %524 = vmatprep.subr.bf16.mxu0 %v419
    %525 = vmatpush1.bf16.msra.mxu0 %v418
    %526 = vmatprep.subr.bf16.mxu0 %v423
    %527 = vmatpush1.bf16.msra.mxu0 %v422
    %528 = vmatprep.subr.bf16.mxu0 %v427
    %529 = vmatpush1.bf16.msra.mxu0 %v426
    %530 = vmatprep.subr.bf16.mxu0 %v431
    %531 = vmatpush1.bf16.msra.mxu0 %v430
    %532 = vmatprep.subr.bf16.mxu0 %v435
    %533 = vmatpush1.bf16.msra.mxu0 %v434
    %534 = vmatprep.mubr.bf16.mxu0 %v159
    %535 = vmatmul.mubr.bf16.gmra.mrb[0].mxu0 %v158
    %v536 = vpop.f32.mrb[0].mxu0
    %v537 = vadd.f32 0.0, %v536
    %v538 = vpop.f32.mrb[0].mxu0
    %v539 = vadd.f32 0.0, %v538
    %v540 = vpop.f32.mrb[0].mxu0
    %v541 = vadd.f32 0.0, %v540
    %v542 = vpop.f32.mrb[0].mxu0
    %v543 = vadd.f32 0.0, %v542
    %544 = vmatprep.mubr.bf16.mxu0 %v161
    %545 = vmatmul.mubr.bf16.gmra.mrb[0].mxu0 %v160
    %v546 = vpop.f32.mrb[0].mxu0
    %v547 = vadd.f32 0.0, %v546
    %v548 = vpop.f32.mrb[0].mxu0
    %v549 = vadd.f32 0.0, %v548
    %v550 = vpop.f32.mrb[0].mxu0
    %v551 = vadd.f32 0.0, %v550
    %v552 = vpop.f32.mrb[0].mxu0
    %v553 = vadd.f32 0.0, %v552
    %554 = vmatprep.mubr.bf16.mxu0 %v163
    %555 = vmatmul.mubr.bf16.gmra.mrb[0].mxu0 %v162
    %v556 = vpop.f32.mrb[0].mxu0
    %v557 = vadd.f32 0.0, %v556
    %v558 = vpop.f32.mrb[0].mxu0
    %v559 = vadd.f32 0.0, %v558
    %v560 = vpop.f32.mrb[0].mxu0
    %v561 = vadd.f32 0.0, %v560
    %v562 = vpop.f32.mrb[0].mxu0
    %v563 = vadd.f32 0.0, %v562
    %564 = vmatprep.mubr.bf16.mxu0 %v165
    %565 = vmatmul.mubr.bf16.gmra.mrb[0].mxu0 %v164
    %v566 = vpop.f32.mrb[0].mxu0
    %v567 = vadd.f32 0.0, %v566
    %v568 = vpop.f32.mrb[0].mxu0
    %v569 = vadd.f32 0.0, %v568
    %v570 = vpop.f32.mrb[0].mxu0
    %v571 = vadd.f32 0.0, %v570
    %v572 = vpop.f32.mrb[0].mxu0
    %v573 = vadd.f32 0.0, %v572
    %574 = vmatprep.mubr.bf16.mxu0 %v167
    %575 = vmatmul.mubr.bf16.gmra.mrb[0].mxu0 %v166
    %v576 = vpop.f32.mrb[0].mxu0
    %v577 = vadd.f32 0.0, %v576
    %v578 = vpop.f32.mrb[0].mxu0
    %v579 = vadd.f32 0.0, %v578
    %v580 = vpop.f32.mrb[0].mxu0
    %v581 = vadd.f32 0.0, %v580
    %v582 = vpop.f32.mrb[0].mxu0
    %v583 = vadd.f32 0.0, %v582
    %584 = vmatprep.mubr.bf16.mxu0 %v169
    %585 = vmatmul.mubr.bf16.gmra.mrb[0].mxu0 %v168
    %v586 = vpop.f32.mrb[0].mxu0
    %v587 = vadd.f32 0.0, %v586
    %v588 = vpop.f32.mrb[0].mxu0
    %v589 = vadd.f32 0.0, %v588
    %v590 = vpop.f32.mrb[0].mxu0
    %v591 = vadd.f32 0.0, %v590
    %v592 = vpop.f32.mrb[0].mxu0
    %v593 = vadd.f32 0.0, %v592
    %594 = vdwg.mxu0
    %595 = vmatprep.subr.bf16.mxu0 %v377
    %596 = vmatpush1.bf16.msra.mxu0 %v376
    %597 = vmatprep.subr.bf16.mxu0 %v381
    %598 = vmatpush1.bf16.msra.mxu0 %v380
    %599 = vmatprep.subr.bf16.mxu0 %v385
    %600 = vmatpush1.bf16.msra.mxu0 %v384
    %601 = vmatprep.subr.bf16.mxu0 %v389
    %602 = vmatpush1.bf16.msra.mxu0 %v388
    %603 = vmatprep.subr.bf16.mxu0 %v393
    %604 = vmatpush1.bf16.msra.mxu0 %v392
    %605 = vmatprep.subr.bf16.mxu0 %v397
    %606 = vmatpush1.bf16.msra.mxu0 %v396
    %607 = vmatprep.subr.bf16.mxu0 %v401
    %608 = vmatpush1.bf16.msra.mxu0 %v400
    %609 = vmatprep.subr.bf16.mxu0 %v405
    %610 = vmatpush1.bf16.msra.mxu0 %v404
    %611 = vmatprep.subr.bf16.mxu0 %v409
    %612 = vmatpush1.bf16.msra.mxu0 %v408
    %613 = vmatprep.subr.bf16.mxu0 %v413
    %614 = vmatpush1.bf16.msra.mxu0 %v412
    %615 = vmatprep.subr.bf16.mxu0 %v417
    %616 = vmatpush1.bf16.msra.mxu0 %v416
    %617 = vmatprep.subr.bf16.mxu0 %v421
    %618 = vmatpush1.bf16.msra.mxu0 %v420
    %619 = vmatprep.subr.bf16.mxu0 %v425
    %620 = vmatpush1.bf16.msra.mxu0 %v424
    %621 = vmatprep.subr.bf16.mxu0 %v429
    %622 = vmatpush1.bf16.msra.mxu0 %v428
    %623 = vmatprep.subr.bf16.mxu0 %v433
    %624 = vmatpush1.bf16.msra.mxu0 %v432
    %625 = vmatprep.subr.bf16.mxu0 %v437
    %626 = vmatpush1.bf16.msra.mxu0 %v436
    %627 = vmatprep.mubr.bf16.mxu0 %v159
    %628 = vmatmul.mubr.bf16.gmra.mrb[0].mxu0 %v158
    %v629 = vpop.f32.mrb[0].mxu0
    %v630 = vadd.f32 0.0, %v629
    %v631 = vpop.f32.mrb[0].mxu0
    %v632 = vadd.f32 0.0, %v631
    %v633 = vpop.f32.mrb[0].mxu0
    %v634 = vadd.f32 0.0, %v633
    %v635 = vpop.f32.mrb[0].mxu0
    %v636 = vadd.f32 0.0, %v635
    %637 = vmatprep.mubr.bf16.mxu0 %v161
    %638 = vmatmul.mubr.bf16.gmra.mrb[0].mxu0 %v160
    %v639 = vpop.f32.mrb[0].mxu0
    %v640 = vadd.f32 0.0, %v639
    %v641 = vpop.f32.mrb[0].mxu0
    %v642 = vadd.f32 0.0, %v641
    %v643 = vpop.f32.mrb[0].mxu0
    %v644 = vadd.f32 0.0, %v643
    %v645 = vpop.f32.mrb[0].mxu0
    %v646 = vadd.f32 0.0, %v645
    %647 = vmatprep.mubr.bf16.mxu0 %v163
    %648 = vmatmul.mubr.bf16.gmra.mrb[0].mxu0 %v162
    %v649 = vpop.f32.mrb[0].mxu0
    %v650 = vadd.f32 0.0, %v649
    %v651 = vpop.f32.mrb[0].mxu0
    %v652 = vadd.f32 0.0, %v651
    %v653 = vpop.f32.mrb[0].mxu0
    %v654 = vadd.f32 0.0, %v653
    %v655 = vpop.f32.mrb[0].mxu0
    %v656 = vadd.f32 0.0, %v655
    %657 = vmatprep.mubr.bf16.mxu0 %v165
    %658 = vmatmul.mubr.bf16.gmra.mrb[0].mxu0 %v164
    %v659 = vpop.f32.mrb[0].mxu0
    %v660 = vadd.f32 0.0, %v659
    %v661 = vpop.f32.mrb[0].mxu0
    %v662 = vadd.f32 0.0, %v661
    %v663 = vpop.f32.mrb[0].mxu0
    %v664 = vadd.f32 0.0, %v663
    %v665 = vpop.f32.mrb[0].mxu0
    %v666 = vadd.f32 0.0, %v665
    %667 = vmatprep.mubr.bf16.mxu0 %v167
    %668 = vmatmul.mubr.bf16.gmra.mrb[0].mxu0 %v166
    %v669 = vpop.f32.mrb[0].mxu0
    %v670 = vadd.f32 0.0, %v669
    %v671 = vpop.f32.mrb[0].mxu0
    %v672 = vadd.f32 0.0, %v671
    %v673 = vpop.f32.mrb[0].mxu0
    %v674 = vadd.f32 0.0, %v673
    %v675 = vpop.f32.mrb[0].mxu0
    %v676 = vadd.f32 0.0, %v675
    %677 = vmatprep.mubr.bf16.mxu0 %v169
    %678 = vmatmul.mubr.bf16.gmra.mrb[0].mxu0 %v168
    %v679 = vpop.f32.mrb[0].mxu0
    %v680 = vadd.f32 0.0, %v679
    %v681 = vpop.f32.mrb[0].mxu0
    %v682 = vadd.f32 0.0, %v681
    %v683 = vpop.f32.mrb[0].mxu0
    %v684 = vadd.f32 0.0, %v683
    %v685 = vpop.f32.mrb[0].mxu0
    %v686 = vadd.f32 0.0, %v685
    %687 = vdwg.mxu0
    %v688 = vmul.f32 %v537, %v537
    %v689 = vmul.f32 %v539, %v539
    %v690 = vmul.f32 %v541, %v541
    %v691 = vmul.f32 %v543, %v543
    %v692 = vmul.f32 %v547, %v547
    %v693 = vmul.f32 %v549, %v549
    %v694 = vmul.f32 %v551, %v551
    %v695 = vmul.f32 %v553, %v553
    %v696 = vmul.f32 %v557, %v557
    %v697 = vmul.f32 %v559, %v559
    %v698 = vmul.f32 %v561, %v561
    %v699 = vmul.f32 %v563, %v563
    %v700 = vmul.f32 %v630, %v630
    %v701 = vmul.f32 %v632, %v632
    %v702 = vmul.f32 %v634, %v634
    %v703 = vmul.f32 %v636, %v636
    %v704 = vmul.f32 %v640, %v640
    %v705 = vmul.f32 %v642, %v642
    %v706 = vmul.f32 %v644, %v644
    %v707 = vmul.f32 %v646, %v646
    %v708 = vmul.f32 %v650, %v650
    %v709 = vmul.f32 %v652, %v652
    %v710 = vmul.f32 %v654, %v654
    %v711 = vmul.f32 %v656, %v656
    %v712 = vadd.f32 %v688, %v700
    %v713 = vadd.f32 %v689, %v701
    %v714 = vadd.f32 %v690, %v702
    %v715 = vadd.f32 %v691, %v703
    %v716 = vadd.f32 %v692, %v704
    %v717 = vadd.f32 %v693, %v705
    %v718 = vadd.f32 %v694, %v706
    %v719 = vadd.f32 %v695, %v707
    %v720 = vadd.f32 %v696, %v708
    %v721 = vadd.f32 %v697, %v709
    %v722 = vadd.f32 %v698, %v710
    %v723 = vadd.f32 %v699, %v711
    %v724 = vmax.f32 %v712, 1e-07
    %v725 = vmax.f32 %v713, 1e-07
    %v726 = vmax.f32 %v714, 1e-07
    %v727 = vmax.f32 %v715, 1e-07
    %v728 = vmax.f32 %v716, 1e-07
    %v729 = vmax.f32 %v717, 1e-07
    %v730 = vmax.f32 %v718, 1e-07
    %v731 = vmax.f32 %v719, 1e-07
    %v732 = vmax.f32 %v720, 1e-07
    %v733 = vmax.f32 %v721, 1e-07
    %v734 = vmax.f32 %v722, 1e-07
    %v735 = vmax.f32 %v723, 1e-07
    %v736 = vmul.f32 %v567, %v567
    %v737 = vmul.f32 %v569, %v569
    %v738 = vmul.f32 %v571, %v571
    %v739 = vmul.f32 %v573, %v573
    %v740 = vmul.f32 %v577, %v577
    %v741 = vmul.f32 %v579, %v579
    %v742 = vmul.f32 %v581, %v581
    %v743 = vmul.f32 %v583, %v583
    %v744 = vmul.f32 %v587, %v587
    %v745 = vmul.f32 %v589, %v589
    %v746 = vmul.f32 %v591, %v591
    %v747 = vmul.f32 %v593, %v593
    %v748 = vmul.f32 %v660, %v660
    %v749 = vmul.f32 %v662, %v662
    %v750 = vmul.f32 %v664, %v664
    %v751 = vmul.f32 %v666, %v666
    %v752 = vmul.f32 %v670, %v670
    %v753 = vmul.f32 %v672, %v672
    %v754 = vmul.f32 %v674, %v674
    %v755 = vmul.f32 %v676, %v676
    %v756 = vmul.f32 %v680, %v680
    %v757 = vmul.f32 %v682, %v682
    %v758 = vmul.f32 %v684, %v684
    %v759 = vmul.f32 %v686, %v686
    %v760 = vadd.f32 %v736, %v748
    %v761 = vadd.f32 %v737, %v749
    %v762 = vadd.f32 %v738, %v750
    %v763 = vadd.f32 %v739, %v751
    %v764 = vadd.f32 %v740, %v752
    %v765 = vadd.f32 %v741, %v753
    %v766 = vadd.f32 %v742, %v754
    %v767 = vadd.f32 %v743, %v755
    %v768 = vadd.f32 %v744, %v756
    %v769 = vadd.f32 %v745, %v757
    %v770 = vadd.f32 %v746, %v758
    %v771 = vadd.f32 %v747, %v759
    %v772 = vmax.f32 %v760, 1e-07
    %v773 = vmax.f32 %v761, 1e-07
    %v774 = vmax.f32 %v762, 1e-07
    %v775 = vmax.f32 %v763, 1e-07
    %v776 = vmax.f32 %v764, 1e-07
    %v777 = vmax.f32 %v765, 1e-07
    %v778 = vmax.f32 %v766, 1e-07
    %v779 = vmax.f32 %v767, 1e-07
    %v780 = vmax.f32 %v768, 1e-07
    %v781 = vmax.f32 %v769, 1e-07
    %v782 = vmax.f32 %v770, 1e-07
    %v783 = vmax.f32 %v771, 1e-07
    %v784 = vand.u32 2147483647, %v537
    %v785 = vand.u32 2147483647, %v539
    %v786 = vand.u32 2147483647, %v541
    %v787 = vand.u32 2147483647, %v543
    %v788 = vand.u32 2147483647, %v547
    %v789 = vand.u32 2147483647, %v549
    %v790 = vand.u32 2147483647, %v551
    %v791 = vand.u32 2147483647, %v553
    %v792 = vand.u32 2147483647, %v557
    %v793 = vand.u32 2147483647, %v559
    %v794 = vand.u32 2147483647, %v561
    %v795 = vand.u32 2147483647, %v563
    %v796 = vand.u32 2147483647, %v630
    %v797 = vand.u32 2147483647, %v632
    %v798 = vand.u32 2147483647, %v634
    %v799 = vand.u32 2147483647, %v636
    %v800 = vand.u32 2147483647, %v640
    %v801 = vand.u32 2147483647, %v642
    %v802 = vand.u32 2147483647, %v644
    %v803 = vand.u32 2147483647, %v646
    %v804 = vand.u32 2147483647, %v650
    %v805 = vand.u32 2147483647, %v652
    %v806 = vand.u32 2147483647, %v654
    %v807 = vand.u32 2147483647, %v656
    %v808 = vmax.f32 %v784, %v796
    %v809 = vmax.f32 %v785, %v797
    %v810 = vmax.f32 %v786, %v798
    %v811 = vmax.f32 %v787, %v799
    %v812 = vmax.f32 %v788, %v800
    %v813 = vmax.f32 %v789, %v801
    %v814 = vmax.f32 %v790, %v802
    %v815 = vmax.f32 %v791, %v803
    %v816 = vmax.f32 %v792, %v804
    %v817 = vmax.f32 %v793, %v805
    %v818 = vmax.f32 %v794, %v806
    %v819 = vmax.f32 %v795, %v807
    %v820 = vmin.f32 %v784, %v796
    %v821 = vmin.f32 %v785, %v797
    %v822 = vmin.f32 %v786, %v798
    %v823 = vmin.f32 %v787, %v799
    %v824 = vmin.f32 %v788, %v800
    %v825 = vmin.f32 %v789, %v801
    %v826 = vmin.f32 %v790, %v802
    %v827 = vmin.f32 %v791, %v803
    %v828 = vmin.f32 %v792, %v804
    %v829 = vmin.f32 %v793, %v805
    %v830 = vmin.f32 %v794, %v806
    %v831 = vmin.f32 %v795, %v807
    %v832 = vmax.f32 %v808, 1e-30
    %v833 = vmax.f32 %v809, 1e-30
    %v834 = vmax.f32 %v810, 1e-30
    %v835 = vmax.f32 %v811, 1e-30
    %v836 = vmax.f32 %v812, 1e-30
    %v837 = vmax.f32 %v813, 1e-30
    %v838 = vmax.f32 %v814, 1e-30
    %v839 = vmax.f32 %v815, 1e-30
    %v840 = vmax.f32 %v816, 1e-30
    %v841 = vmax.f32 %v817, 1e-30
    %v842 = vmax.f32 %v818, 1e-30
    %v843 = vmax.f32 %v819, 1e-30
    %v844 = vrcp.pop %v832
    %v845 = vrcp.pop %v833
    %v846 = vrcp.pop %v834
    %v847 = vrcp.pop %v835
    %v848 = vrcp.pop %v836
    %v849 = vrcp.pop %v837
    %v850 = vrcp.pop %v838
    %v851 = vrcp.pop %v839
    %v852 = vrcp.pop %v840
    %v853 = vrcp.pop %v841
    %v854 = vrcp.pop %v842
    %v855 = vrcp.pop %v843
    %v856 = vmul.f32 %v820, %v844
    %v857 = vmul.f32 %v821, %v845
    %v858 = vmul.f32 %v822, %v846
    %v859 = vmul.f32 %v823, %v847
    %v860 = vmul.f32 %v824, %v848
    %v861 = vmul.f32 %v825, %v849
    %v862 = vmul.f32 %v826, %v850
    %v863 = vmul.f32 %v827, %v851
    %v864 = vmul.f32 %v828, %v852
    %v865 = vmul.f32 %v829, %v853
    %v866 = vmul.f32 %v830, %v854
    %v867 = vmul.f32 %v831, %v855
    %vm868 = vcmp.gt.f32.partialorder %v856, 0.41421357
    %vm869 = vcmp.gt.f32.partialorder %v857, 0.41421357
    %vm870 = vcmp.gt.f32.partialorder %v858, 0.41421357
    %vm871 = vcmp.gt.f32.partialorder %v859, 0.41421357
    %vm872 = vcmp.gt.f32.partialorder %v860, 0.41421357
    %vm873 = vcmp.gt.f32.partialorder %v861, 0.41421357
    %vm874 = vcmp.gt.f32.partialorder %v862, 0.41421357
    %vm875 = vcmp.gt.f32.partialorder %v863, 0.41421357
    %vm876 = vcmp.gt.f32.partialorder %v864, 0.41421357
    %vm877 = vcmp.gt.f32.partialorder %v865, 0.41421357
    %vm878 = vcmp.gt.f32.partialorder %v866, 0.41421357
    %vm879 = vcmp.gt.f32.partialorder %v867, 0.41421357
    %v880 = vsub.f32 %v856, 1.0
    %v881 = vsub.f32 %v857, 1.0
    %v882 = vsub.f32 %v858, 1.0
    %v883 = vsub.f32 %v859, 1.0
    %v884 = vsub.f32 %v860, 1.0
    %v885 = vsub.f32 %v861, 1.0
    %v886 = vsub.f32 %v862, 1.0
    %v887 = vsub.f32 %v863, 1.0
    %v888 = vsub.f32 %v864, 1.0
    %v889 = vsub.f32 %v865, 1.0
    %v890 = vsub.f32 %v866, 1.0
    %v891 = vsub.f32 %v867, 1.0
    %v892 = vadd.f32 %v856, 1.0
    %v893 = vadd.f32 %v857, 1.0
    %v894 = vadd.f32 %v858, 1.0
    %v895 = vadd.f32 %v859, 1.0
    %v896 = vadd.f32 %v860, 1.0
    %v897 = vadd.f32 %v861, 1.0
    %v898 = vadd.f32 %v862, 1.0
    %v899 = vadd.f32 %v863, 1.0
    %v900 = vadd.f32 %v864, 1.0
    %v901 = vadd.f32 %v865, 1.0
    %v902 = vadd.f32 %v866, 1.0
    %v903 = vadd.f32 %v867, 1.0
    %v904 = vrcp.pop %v892
    %v905 = vrcp.pop %v893
    %v906 = vrcp.pop %v894
    %v907 = vrcp.pop %v895
    %v908 = vrcp.pop %v896
    %v909 = vrcp.pop %v897
    %v910 = vrcp.pop %v898
    %v911 = vrcp.pop %v899
    %v912 = vrcp.pop %v900
    %v913 = vrcp.pop %v901
    %v914 = vrcp.pop %v902
    %v915 = vrcp.pop %v903
    %v916 = vmul.f32 %v880, %v904
    %v917 = vmul.f32 %v881, %v905
    %v918 = vmul.f32 %v882, %v906
    %v919 = vmul.f32 %v883, %v907
    %v920 = vmul.f32 %v884, %v908
    %v921 = vmul.f32 %v885, %v909
    %v922 = vmul.f32 %v886, %v910
    %v923 = vmul.f32 %v887, %v911
    %v924 = vmul.f32 %v888, %v912
    %v925 = vmul.f32 %v889, %v913
    %v926 = vmul.f32 %v890, %v914
    %v927 = vmul.f32 %v891, %v915
    %v928 = vsel %vm868, %v916, %v856
    %v929 = vsel %vm869, %v917, %v857
    %v930 = vsel %vm870, %v918, %v858
    %v931 = vsel %vm871, %v919, %v859
    %v932 = vsel %vm872, %v920, %v860
    %v933 = vsel %vm873, %v921, %v861
    %v934 = vsel %vm874, %v922, %v862
    %v935 = vsel %vm875, %v923, %v863
    %v936 = vsel %vm876, %v924, %v864
    %v937 = vsel %vm877, %v925, %v865
    %v938 = vsel %vm878, %v926, %v866
    %v939 = vsel %vm879, %v927, %v867
    %v940 = vmul.f32 %v928, %v928
    %v941 = vmul.f32 %v929, %v929
    %v942 = vmul.f32 %v930, %v930
    %v943 = vmul.f32 %v931, %v931
    %v944 = vmul.f32 %v932, %v932
    %v945 = vmul.f32 %v933, %v933
    %v946 = vmul.f32 %v934, %v934
    %v947 = vmul.f32 %v935, %v935
    %v948 = vmul.f32 %v936, %v936
    %v949 = vmul.f32 %v937, %v937
    %v950 = vmul.f32 %v938, %v938
    %v951 = vmul.f32 %v939, %v939
    %v952 = vmul.f32 %v940, 0.080537446
    %v953 = vmul.f32 %v941, 0.080537446
    %v954 = vmul.f32 %v942, 0.080537446
    %v955 = vmul.f32 %v943, 0.080537446
    %v956 = vmul.f32 %v944, 0.080537446
    %v957 = vmul.f32 %v945, 0.080537446
    %v958 = vmul.f32 %v946, 0.080537446
    %v959 = vmul.f32 %v947, 0.080537446
    %v960 = vmul.f32 %v948, 0.080537446
    %v961 = vmul.f32 %v949, 0.080537446
    %v962 = vmul.f32 %v950, 0.080537446
    %v963 = vmul.f32 %v951, 0.080537446
    %v964 = vsub.f32 %v952, 0.13877685
    %v965 = vsub.f32 %v953, 0.13877685
    %v966 = vsub.f32 %v954, 0.13877685
    %v967 = vsub.f32 %v955, 0.13877685
    %v968 = vsub.f32 %v956, 0.13877685
    %v969 = vsub.f32 %v957, 0.13877685
    %v970 = vsub.f32 %v958, 0.13877685
    %v971 = vsub.f32 %v959, 0.13877685
    %v972 = vsub.f32 %v960, 0.13877685
    %v973 = vsub.f32 %v961, 0.13877685
    %v974 = vsub.f32 %v962, 0.13877685
    %v975 = vsub.f32 %v963, 0.13877685
    %v976 = vmul.f32 %v964, %v940
    %v977 = vmul.f32 %v965, %v941
    %v978 = vmul.f32 %v966, %v942
    %v979 = vmul.f32 %v967, %v943
    %v980 = vmul.f32 %v968, %v944
    %v981 = vmul.f32 %v969, %v945
    %v982 = vmul.f32 %v970, %v946
    %v983 = vmul.f32 %v971, %v947
    %v984 = vmul.f32 %v972, %v948
    %v985 = vmul.f32 %v973, %v949
    %v986 = vmul.f32 %v974, %v950
    %v987 = vmul.f32 %v975, %v951
    %v988 = vadd.f32 %v976, 0.19977711
    %v989 = vadd.f32 %v977, 0.19977711
    %v990 = vadd.f32 %v978, 0.19977711
    %v991 = vadd.f32 %v979, 0.19977711
    %v992 = vadd.f32 %v980, 0.19977711
    %v993 = vadd.f32 %v981, 0.19977711
    %v994 = vadd.f32 %v982, 0.19977711
    %v995 = vadd.f32 %v983, 0.19977711
    %v996 = vadd.f32 %v984, 0.19977711
    %v997 = vadd.f32 %v985, 0.19977711
    %v998 = vadd.f32 %v986, 0.19977711
    %v999 = vadd.f32 %v987, 0.19977711
    %v1000 = vmul.f32 %v988, %v940
    %v1001 = vmul.f32 %v989, %v941
    %v1002 = vmul.f32 %v990, %v942
    %v1003 = vmul.f32 %v991, %v943
    %v1004 = vmul.f32 %v992, %v944
    %v1005 = vmul.f32 %v993, %v945
    %v1006 = vmul.f32 %v994, %v946
    %v1007 = vmul.f32 %v995, %v947
    %v1008 = vmul.f32 %v996, %v948
    %v1009 = vmul.f32 %v997, %v949
    %v1010 = vmul.f32 %v998, %v950
    %v1011 = vmul.f32 %v999, %v951
    %v1012 = vsub.f32 %v1000, 0.3333295
    %v1013 = vsub.f32 %v1001, 0.3333295
    %v1014 = vsub.f32 %v1002, 0.3333295
    %v1015 = vsub.f32 %v1003, 0.3333295
    %v1016 = vsub.f32 %v1004, 0.3333295
    %v1017 = vsub.f32 %v1005, 0.3333295
    %v1018 = vsub.f32 %v1006, 0.3333295
    %v1019 = vsub.f32 %v1007, 0.3333295
    %v1020 = vsub.f32 %v1008, 0.3333295
    %v1021 = vsub.f32 %v1009, 0.3333295
    %v1022 = vsub.f32 %v1010, 0.3333295
    %v1023 = vsub.f32 %v1011, 0.3333295
    %v1024 = vmul.f32 %v1012, %v940
    %v1025 = vmul.f32 %v1013, %v941
    %v1026 = vmul.f32 %v1014, %v942
    %v1027 = vmul.f32 %v1015, %v943
    %v1028 = vmul.f32 %v1016, %v944
    %v1029 = vmul.f32 %v1017, %v945
    %v1030 = vmul.f32 %v1018, %v946
    %v1031 = vmul.f32 %v1019, %v947
    %v1032 = vmul.f32 %v1020, %v948
    %v1033 = vmul.f32 %v1021, %v949
    %v1034 = vmul.f32 %v1022, %v950
    %v1035 = vmul.f32 %v1023, %v951
    %v1036 = vmul.f32 %v1024, %v928
    %v1037 = vmul.f32 %v1025, %v929
    %v1038 = vmul.f32 %v1026, %v930
    %v1039 = vmul.f32 %v1027, %v931
    %v1040 = vmul.f32 %v1028, %v932
    %v1041 = vmul.f32 %v1029, %v933
    %v1042 = vmul.f32 %v1030, %v934
    %v1043 = vmul.f32 %v1031, %v935
    %v1044 = vmul.f32 %v1032, %v936
    %v1045 = vmul.f32 %v1033, %v937
    %v1046 = vmul.f32 %v1034, %v938
    %v1047 = vmul.f32 %v1035, %v939
    %v1048 = vadd.f32 %v1036, %v928
    %v1049 = vadd.f32 %v1037, %v929
    %v1050 = vadd.f32 %v1038, %v930
    %v1051 = vadd.f32 %v1039, %v931
    %v1052 = vadd.f32 %v1040, %v932
    %v1053 = vadd.f32 %v1041, %v933
    %v1054 = vadd.f32 %v1042, %v934
    %v1055 = vadd.f32 %v1043, %v935
    %v1056 = vadd.f32 %v1044, %v936
    %v1057 = vadd.f32 %v1045, %v937
    %v1058 = vadd.f32 %v1046, %v938
    %v1059 = vadd.f32 %v1047, %v939
    %v1060 = vsel %vm868, 0.7853982, 0.0
    %v1061 = vsel %vm869, 0.7853982, 0.0
    %v1062 = vsel %vm870, 0.7853982, 0.0
    %v1063 = vsel %vm871, 0.7853982, 0.0
    %v1064 = vsel %vm872, 0.7853982, 0.0
    %v1065 = vsel %vm873, 0.7853982, 0.0
    %v1066 = vsel %vm874, 0.7853982, 0.0
    %v1067 = vsel %vm875, 0.7853982, 0.0
    %v1068 = vsel %vm876, 0.7853982, 0.0
    %v1069 = vsel %vm877, 0.7853982, 0.0
    %v1070 = vsel %vm878, 0.7853982, 0.0
    %v1071 = vsel %vm879, 0.7853982, 0.0
    %v1072 = vadd.f32 %v1048, %v1060
    %v1073 = vadd.f32 %v1049, %v1061
    %v1074 = vadd.f32 %v1050, %v1062
    %v1075 = vadd.f32 %v1051, %v1063
    %v1076 = vadd.f32 %v1052, %v1064
    %v1077 = vadd.f32 %v1053, %v1065
    %v1078 = vadd.f32 %v1054, %v1066
    %v1079 = vadd.f32 %v1055, %v1067
    %v1080 = vadd.f32 %v1056, %v1068
    %v1081 = vadd.f32 %v1057, %v1069
    %v1082 = vadd.f32 %v1058, %v1070
    %v1083 = vadd.f32 %v1059, %v1071
    %vm1084 = vcmp.gt.f32.partialorder %v796, %v784
    %vm1085 = vcmp.gt.f32.partialorder %v797, %v785
    %vm1086 = vcmp.gt.f32.partialorder %v798, %v786
    %vm1087 = vcmp.gt.f32.partialorder %v799, %v787
    %vm1088 = vcmp.gt.f32.partialorder %v800, %v788
    %vm1089 = vcmp.gt.f32.partialorder %v801, %v789
    %vm1090 = vcmp.gt.f32.partialorder %v802, %v790
    %vm1091 = vcmp.gt.f32.partialorder %v803, %v791
    %vm1092 = vcmp.gt.f32.partialorder %v804, %v792
    %vm1093 = vcmp.gt.f32.partialorder %v805, %v793
    %vm1094 = vcmp.gt.f32.partialorder %v806, %v794
    %vm1095 = vcmp.gt.f32.partialorder %v807, %v795
    %v1096 = vsub.f32 1.5707964, %v1072
    %v1097 = vsub.f32 1.5707964, %v1073
    %v1098 = vsub.f32 1.5707964, %v1074
    %v1099 = vsub.f32 1.5707964, %v1075
    %v1100 = vsub.f32 1.5707964, %v1076
    %v1101 = vsub.f32 1.5707964, %v1077
    %v1102 = vsub.f32 1.5707964, %v1078
    %v1103 = vsub.f32 1.5707964, %v1079
    %v1104 = vsub.f32 1.5707964, %v1080
    %v1105 = vsub.f32 1.5707964, %v1081
    %v1106 = vsub.f32 1.5707964, %v1082
    %v1107 = vsub.f32 1.5707964, %v1083
    %v1108 = vsel %vm1084, %v1096, %v1072
    %v1109 = vsel %vm1085, %v1097, %v1073
    %v1110 = vsel %vm1086, %v1098, %v1074
    %v1111 = vsel %vm1087, %v1099, %v1075
    %v1112 = vsel %vm1088, %v1100, %v1076
    %v1113 = vsel %vm1089, %v1101, %v1077
    %v1114 = vsel %vm1090, %v1102, %v1078
    %v1115 = vsel %vm1091, %v1103, %v1079
    %v1116 = vsel %vm1092, %v1104, %v1080
    %v1117 = vsel %vm1093, %v1105, %v1081
    %v1118 = vsel %vm1094, %v1106, %v1082
    %v1119 = vsel %vm1095, %v1107, %v1083
    %vm1120 = vcmp.lt.f32.partialorder %v537, 0.0
    %vm1121 = vcmp.lt.f32.partialorder %v539, 0.0
    %vm1122 = vcmp.lt.f32.partialorder %v541, 0.0
    %vm1123 = vcmp.lt.f32.partialorder %v543, 0.0
    %vm1124 = vcmp.lt.f32.partialorder %v547, 0.0
    %vm1125 = vcmp.lt.f32.partialorder %v549, 0.0
    %vm1126 = vcmp.lt.f32.partialorder %v551, 0.0
    %vm1127 = vcmp.lt.f32.partialorder %v553, 0.0
    %vm1128 = vcmp.lt.f32.partialorder %v557, 0.0
    %vm1129 = vcmp.lt.f32.partialorder %v559, 0.0
    %vm1130 = vcmp.lt.f32.partialorder %v561, 0.0
    %vm1131 = vcmp.lt.f32.partialorder %v563, 0.0
    %v1132 = vsub.f32 3.1415927, %v1108
    %v1133 = vsub.f32 3.1415927, %v1109
    %v1134 = vsub.f32 3.1415927, %v1110
    %v1135 = vsub.f32 3.1415927, %v1111
    %v1136 = vsub.f32 3.1415927, %v1112
    %v1137 = vsub.f32 3.1415927, %v1113
    %v1138 = vsub.f32 3.1415927, %v1114
    %v1139 = vsub.f32 3.1415927, %v1115
    %v1140 = vsub.f32 3.1415927, %v1116
    %v1141 = vsub.f32 3.1415927, %v1117
    %v1142 = vsub.f32 3.1415927, %v1118
    %v1143 = vsub.f32 3.1415927, %v1119
    %v1144 = vsel %vm1120, %v1132, %v1108
    %v1145 = vsel %vm1121, %v1133, %v1109
    %v1146 = vsel %vm1122, %v1134, %v1110
    %v1147 = vsel %vm1123, %v1135, %v1111
    %v1148 = vsel %vm1124, %v1136, %v1112
    %v1149 = vsel %vm1125, %v1137, %v1113
    %v1150 = vsel %vm1126, %v1138, %v1114
    %v1151 = vsel %vm1127, %v1139, %v1115
    %v1152 = vsel %vm1128, %v1140, %v1116
    %v1153 = vsel %vm1129, %v1141, %v1117
    %v1154 = vsel %vm1130, %v1142, %v1118
    %v1155 = vsel %vm1131, %v1143, %v1119
    %vm1156 = vcmp.lt.f32.partialorder %v630, 0.0
    %vm1157 = vcmp.lt.f32.partialorder %v632, 0.0
    %vm1158 = vcmp.lt.f32.partialorder %v634, 0.0
    %vm1159 = vcmp.lt.f32.partialorder %v636, 0.0
    %vm1160 = vcmp.lt.f32.partialorder %v640, 0.0
    %vm1161 = vcmp.lt.f32.partialorder %v642, 0.0
    %vm1162 = vcmp.lt.f32.partialorder %v644, 0.0
    %vm1163 = vcmp.lt.f32.partialorder %v646, 0.0
    %vm1164 = vcmp.lt.f32.partialorder %v650, 0.0
    %vm1165 = vcmp.lt.f32.partialorder %v652, 0.0
    %vm1166 = vcmp.lt.f32.partialorder %v654, 0.0
    %vm1167 = vcmp.lt.f32.partialorder %v656, 0.0
    %v1168 = vsub.f32 0.0, %v1144
    %v1169 = vsub.f32 0.0, %v1145
    %v1170 = vsub.f32 0.0, %v1146
    %v1171 = vsub.f32 0.0, %v1147
    %v1172 = vsub.f32 0.0, %v1148
    %v1173 = vsub.f32 0.0, %v1149
    %v1174 = vsub.f32 0.0, %v1150
    %v1175 = vsub.f32 0.0, %v1151
    %v1176 = vsub.f32 0.0, %v1152
    %v1177 = vsub.f32 0.0, %v1153
    %v1178 = vsub.f32 0.0, %v1154
    %v1179 = vsub.f32 0.0, %v1155
    %v1180 = vsel %vm1156, %v1168, %v1144
    %v1181 = vsel %vm1157, %v1169, %v1145
    %v1182 = vsel %vm1158, %v1170, %v1146
    %v1183 = vsel %vm1159, %v1171, %v1147
    %v1184 = vsel %vm1160, %v1172, %v1148
    %v1185 = vsel %vm1161, %v1173, %v1149
    %v1186 = vsel %vm1162, %v1174, %v1150
    %v1187 = vsel %vm1163, %v1175, %v1151
    %v1188 = vsel %vm1164, %v1176, %v1152
    %v1189 = vsel %vm1165, %v1177, %v1153
    %v1190 = vsel %vm1166, %v1178, %v1154
    %v1191 = vsel %vm1167, %v1179, %v1155
    %v1192 = vand.u32 2147483647, %v567
    %v1193 = vand.u32 2147483647, %v569
    %v1194 = vand.u32 2147483647, %v571
    %v1195 = vand.u32 2147483647, %v573
    %v1196 = vand.u32 2147483647, %v577
    %v1197 = vand.u32 2147483647, %v579
    %v1198 = vand.u32 2147483647, %v581
    %v1199 = vand.u32 2147483647, %v583
    %v1200 = vand.u32 2147483647, %v587
    %v1201 = vand.u32 2147483647, %v589
    %v1202 = vand.u32 2147483647, %v591
    %v1203 = vand.u32 2147483647, %v593
    %v1204 = vand.u32 2147483647, %v660
    %v1205 = vand.u32 2147483647, %v662
    %v1206 = vand.u32 2147483647, %v664
    %v1207 = vand.u32 2147483647, %v666
    %v1208 = vand.u32 2147483647, %v670
    %v1209 = vand.u32 2147483647, %v672
    %v1210 = vand.u32 2147483647, %v674
    %v1211 = vand.u32 2147483647, %v676
    %v1212 = vand.u32 2147483647, %v680
    %v1213 = vand.u32 2147483647, %v682
    %v1214 = vand.u32 2147483647, %v684
    %v1215 = vand.u32 2147483647, %v686
    %v1216 = vmax.f32 %v1192, %v1204
    %v1217 = vmax.f32 %v1193, %v1205
    %v1218 = vmax.f32 %v1194, %v1206
    %v1219 = vmax.f32 %v1195, %v1207
    %v1220 = vmax.f32 %v1196, %v1208
    %v1221 = vmax.f32 %v1197, %v1209
    %v1222 = vmax.f32 %v1198, %v1210
    %v1223 = vmax.f32 %v1199, %v1211
    %v1224 = vmax.f32 %v1200, %v1212
    %v1225 = vmax.f32 %v1201, %v1213
    %v1226 = vmax.f32 %v1202, %v1214
    %v1227 = vmax.f32 %v1203, %v1215
    %v1228 = vmin.f32 %v1192, %v1204
    %v1229 = vmin.f32 %v1193, %v1205
    %v1230 = vmin.f32 %v1194, %v1206
    %v1231 = vmin.f32 %v1195, %v1207
    %v1232 = vmin.f32 %v1196, %v1208
    %v1233 = vmin.f32 %v1197, %v1209
    %v1234 = vmin.f32 %v1198, %v1210
    %v1235 = vmin.f32 %v1199, %v1211
    %v1236 = vmin.f32 %v1200, %v1212
    %v1237 = vmin.f32 %v1201, %v1213
    %v1238 = vmin.f32 %v1202, %v1214
    %v1239 = vmin.f32 %v1203, %v1215
    %v1240 = vmax.f32 %v1216, 1e-30
    %v1241 = vmax.f32 %v1217, 1e-30
    %v1242 = vmax.f32 %v1218, 1e-30
    %v1243 = vmax.f32 %v1219, 1e-30
    %v1244 = vmax.f32 %v1220, 1e-30
    %v1245 = vmax.f32 %v1221, 1e-30
    %v1246 = vmax.f32 %v1222, 1e-30
    %v1247 = vmax.f32 %v1223, 1e-30
    %v1248 = vmax.f32 %v1224, 1e-30
    %v1249 = vmax.f32 %v1225, 1e-30
    %v1250 = vmax.f32 %v1226, 1e-30
    %v1251 = vmax.f32 %v1227, 1e-30
    %v1252 = vrcp.pop %v1240
    %v1253 = vrcp.pop %v1241
    %v1254 = vrcp.pop %v1242
    %v1255 = vrcp.pop %v1243
    %v1256 = vrcp.pop %v1244
    %v1257 = vrcp.pop %v1245
    %v1258 = vrcp.pop %v1246
    %v1259 = vrcp.pop %v1247
    %v1260 = vrcp.pop %v1248
    %v1261 = vrcp.pop %v1249
    %v1262 = vrcp.pop %v1250
    %v1263 = vrcp.pop %v1251
    %v1264 = vmul.f32 %v1228, %v1252
    %v1265 = vmul.f32 %v1229, %v1253
    %v1266 = vmul.f32 %v1230, %v1254
    %v1267 = vmul.f32 %v1231, %v1255
    %v1268 = vmul.f32 %v1232, %v1256
    %v1269 = vmul.f32 %v1233, %v1257
    %v1270 = vmul.f32 %v1234, %v1258
    %v1271 = vmul.f32 %v1235, %v1259
    %v1272 = vmul.f32 %v1236, %v1260
    %v1273 = vmul.f32 %v1237, %v1261
    %v1274 = vmul.f32 %v1238, %v1262
    %v1275 = vmul.f32 %v1239, %v1263
    %vm1276 = vcmp.gt.f32.partialorder %v1264, 0.41421357
    %vm1277 = vcmp.gt.f32.partialorder %v1265, 0.41421357
    %vm1278 = vcmp.gt.f32.partialorder %v1266, 0.41421357
    %vm1279 = vcmp.gt.f32.partialorder %v1267, 0.41421357
    %vm1280 = vcmp.gt.f32.partialorder %v1268, 0.41421357
    %vm1281 = vcmp.gt.f32.partialorder %v1269, 0.41421357
    %vm1282 = vcmp.gt.f32.partialorder %v1270, 0.41421357
    %vm1283 = vcmp.gt.f32.partialorder %v1271, 0.41421357
    %vm1284 = vcmp.gt.f32.partialorder %v1272, 0.41421357
    %vm1285 = vcmp.gt.f32.partialorder %v1273, 0.41421357
    %vm1286 = vcmp.gt.f32.partialorder %v1274, 0.41421357
    %vm1287 = vcmp.gt.f32.partialorder %v1275, 0.41421357
    %v1288 = vsub.f32 %v1264, 1.0
    %v1289 = vsub.f32 %v1265, 1.0
    %v1290 = vsub.f32 %v1266, 1.0
    %v1291 = vsub.f32 %v1267, 1.0
    %v1292 = vsub.f32 %v1268, 1.0
    %v1293 = vsub.f32 %v1269, 1.0
    %v1294 = vsub.f32 %v1270, 1.0
    %v1295 = vsub.f32 %v1271, 1.0
    %v1296 = vsub.f32 %v1272, 1.0
    %v1297 = vsub.f32 %v1273, 1.0
    %v1298 = vsub.f32 %v1274, 1.0
    %v1299 = vsub.f32 %v1275, 1.0
    %v1300 = vadd.f32 %v1264, 1.0
    %v1301 = vadd.f32 %v1265, 1.0
    %v1302 = vadd.f32 %v1266, 1.0
    %v1303 = vadd.f32 %v1267, 1.0
    %v1304 = vadd.f32 %v1268, 1.0
    %v1305 = vadd.f32 %v1269, 1.0
    %v1306 = vadd.f32 %v1270, 1.0
    %v1307 = vadd.f32 %v1271, 1.0
    %v1308 = vadd.f32 %v1272, 1.0
    %v1309 = vadd.f32 %v1273, 1.0
    %v1310 = vadd.f32 %v1274, 1.0
    %v1311 = vadd.f32 %v1275, 1.0
    %v1312 = vrcp.pop %v1300
    %v1313 = vrcp.pop %v1301
    %v1314 = vrcp.pop %v1302
    %v1315 = vrcp.pop %v1303
    %v1316 = vrcp.pop %v1304
    %v1317 = vrcp.pop %v1305
    %v1318 = vrcp.pop %v1306
    %v1319 = vrcp.pop %v1307
    %v1320 = vrcp.pop %v1308
    %v1321 = vrcp.pop %v1309
    %v1322 = vrcp.pop %v1310
    %v1323 = vrcp.pop %v1311
    %v1324 = vmul.f32 %v1288, %v1312
    %v1325 = vmul.f32 %v1289, %v1313
    %v1326 = vmul.f32 %v1290, %v1314
    %v1327 = vmul.f32 %v1291, %v1315
    %v1328 = vmul.f32 %v1292, %v1316
    %v1329 = vmul.f32 %v1293, %v1317
    %v1330 = vmul.f32 %v1294, %v1318
    %v1331 = vmul.f32 %v1295, %v1319
    %v1332 = vmul.f32 %v1296, %v1320
    %v1333 = vmul.f32 %v1297, %v1321
    %v1334 = vmul.f32 %v1298, %v1322
    %v1335 = vmul.f32 %v1299, %v1323
    %v1336 = vsel %vm1276, %v1324, %v1264
    %v1337 = vsel %vm1277, %v1325, %v1265
    %v1338 = vsel %vm1278, %v1326, %v1266
    %v1339 = vsel %vm1279, %v1327, %v1267
    %v1340 = vsel %vm1280, %v1328, %v1268
    %v1341 = vsel %vm1281, %v1329, %v1269
    %v1342 = vsel %vm1282, %v1330, %v1270
    %v1343 = vsel %vm1283, %v1331, %v1271
    %v1344 = vsel %vm1284, %v1332, %v1272
    %v1345 = vsel %vm1285, %v1333, %v1273
    %v1346 = vsel %vm1286, %v1334, %v1274
    %v1347 = vsel %vm1287, %v1335, %v1275
    %v1348 = vmul.f32 %v1336, %v1336
    %v1349 = vmul.f32 %v1337, %v1337
    %v1350 = vmul.f32 %v1338, %v1338
    %v1351 = vmul.f32 %v1339, %v1339
    %v1352 = vmul.f32 %v1340, %v1340
    %v1353 = vmul.f32 %v1341, %v1341
    %v1354 = vmul.f32 %v1342, %v1342
    %v1355 = vmul.f32 %v1343, %v1343
    %v1356 = vmul.f32 %v1344, %v1344
    %v1357 = vmul.f32 %v1345, %v1345
    %v1358 = vmul.f32 %v1346, %v1346
    %v1359 = vmul.f32 %v1347, %v1347
    %v1360 = vmul.f32 %v1348, 0.080537446
    %v1361 = vmul.f32 %v1349, 0.080537446
    %v1362 = vmul.f32 %v1350, 0.080537446
    %v1363 = vmul.f32 %v1351, 0.080537446
    %v1364 = vmul.f32 %v1352, 0.080537446
    %v1365 = vmul.f32 %v1353, 0.080537446
    %v1366 = vmul.f32 %v1354, 0.080537446
    %v1367 = vmul.f32 %v1355, 0.080537446
    %v1368 = vmul.f32 %v1356, 0.080537446
    %v1369 = vmul.f32 %v1357, 0.080537446
    %v1370 = vmul.f32 %v1358, 0.080537446
    %v1371 = vmul.f32 %v1359, 0.080537446
    %v1372 = vsub.f32 %v1360, 0.13877685
    %v1373 = vsub.f32 %v1361, 0.13877685
    %v1374 = vsub.f32 %v1362, 0.13877685
    %v1375 = vsub.f32 %v1363, 0.13877685
    %v1376 = vsub.f32 %v1364, 0.13877685
    %v1377 = vsub.f32 %v1365, 0.13877685
    %v1378 = vsub.f32 %v1366, 0.13877685
    %v1379 = vsub.f32 %v1367, 0.13877685
    %v1380 = vsub.f32 %v1368, 0.13877685
    %v1381 = vsub.f32 %v1369, 0.13877685
    %v1382 = vsub.f32 %v1370, 0.13877685
    %v1383 = vsub.f32 %v1371, 0.13877685
    %v1384 = vmul.f32 %v1372, %v1348
    %v1385 = vmul.f32 %v1373, %v1349
    %v1386 = vmul.f32 %v1374, %v1350
    %v1387 = vmul.f32 %v1375, %v1351
    %v1388 = vmul.f32 %v1376, %v1352
    %v1389 = vmul.f32 %v1377, %v1353
    %v1390 = vmul.f32 %v1378, %v1354
    %v1391 = vmul.f32 %v1379, %v1355
    %v1392 = vmul.f32 %v1380, %v1356
    %v1393 = vmul.f32 %v1381, %v1357
    %v1394 = vmul.f32 %v1382, %v1358
    %v1395 = vmul.f32 %v1383, %v1359
    %v1396 = vadd.f32 %v1384, 0.19977711
    %v1397 = vadd.f32 %v1385, 0.19977711
    %v1398 = vadd.f32 %v1386, 0.19977711
    %v1399 = vadd.f32 %v1387, 0.19977711
    %v1400 = vadd.f32 %v1388, 0.19977711
    %v1401 = vadd.f32 %v1389, 0.19977711
    %v1402 = vadd.f32 %v1390, 0.19977711
    %v1403 = vadd.f32 %v1391, 0.19977711
    %v1404 = vadd.f32 %v1392, 0.19977711
    %v1405 = vadd.f32 %v1393, 0.19977711
    %v1406 = vadd.f32 %v1394, 0.19977711
    %v1407 = vadd.f32 %v1395, 0.19977711
    %v1408 = vmul.f32 %v1396, %v1348
    %v1409 = vmul.f32 %v1397, %v1349
    %v1410 = vmul.f32 %v1398, %v1350
    %v1411 = vmul.f32 %v1399, %v1351
    %v1412 = vmul.f32 %v1400, %v1352
    %v1413 = vmul.f32 %v1401, %v1353
    %v1414 = vmul.f32 %v1402, %v1354
    %v1415 = vmul.f32 %v1403, %v1355
    %v1416 = vmul.f32 %v1404, %v1356
    %v1417 = vmul.f32 %v1405, %v1357
    %v1418 = vmul.f32 %v1406, %v1358
    %v1419 = vmul.f32 %v1407, %v1359
    %v1420 = vsub.f32 %v1408, 0.3333295
    %v1421 = vsub.f32 %v1409, 0.3333295
    %v1422 = vsub.f32 %v1410, 0.3333295
    %v1423 = vsub.f32 %v1411, 0.3333295
    %v1424 = vsub.f32 %v1412, 0.3333295
    %v1425 = vsub.f32 %v1413, 0.3333295
    %v1426 = vsub.f32 %v1414, 0.3333295
    %v1427 = vsub.f32 %v1415, 0.3333295
    %v1428 = vsub.f32 %v1416, 0.3333295
    %v1429 = vsub.f32 %v1417, 0.3333295
    %v1430 = vsub.f32 %v1418, 0.3333295
    %v1431 = vsub.f32 %v1419, 0.3333295
    %v1432 = vmul.f32 %v1420, %v1348
    %v1433 = vmul.f32 %v1421, %v1349
    %v1434 = vmul.f32 %v1422, %v1350
    %v1435 = vmul.f32 %v1423, %v1351
    %v1436 = vmul.f32 %v1424, %v1352
    %v1437 = vmul.f32 %v1425, %v1353
    %v1438 = vmul.f32 %v1426, %v1354
    %v1439 = vmul.f32 %v1427, %v1355
    %v1440 = vmul.f32 %v1428, %v1356
    %v1441 = vmul.f32 %v1429, %v1357
    %v1442 = vmul.f32 %v1430, %v1358
    %v1443 = vmul.f32 %v1431, %v1359
    %v1444 = vmul.f32 %v1432, %v1336
    %v1445 = vmul.f32 %v1433, %v1337
    %v1446 = vmul.f32 %v1434, %v1338
    %v1447 = vmul.f32 %v1435, %v1339
    %v1448 = vmul.f32 %v1436, %v1340
    %v1449 = vmul.f32 %v1437, %v1341
    %v1450 = vmul.f32 %v1438, %v1342
    %v1451 = vmul.f32 %v1439, %v1343
    %v1452 = vmul.f32 %v1440, %v1344
    %v1453 = vmul.f32 %v1441, %v1345
    %v1454 = vmul.f32 %v1442, %v1346
    %v1455 = vmul.f32 %v1443, %v1347
    %v1456 = vadd.f32 %v1444, %v1336
    %v1457 = vadd.f32 %v1445, %v1337
    %v1458 = vadd.f32 %v1446, %v1338
    %v1459 = vadd.f32 %v1447, %v1339
    %v1460 = vadd.f32 %v1448, %v1340
    %v1461 = vadd.f32 %v1449, %v1341
    %v1462 = vadd.f32 %v1450, %v1342
    %v1463 = vadd.f32 %v1451, %v1343
    %v1464 = vadd.f32 %v1452, %v1344
    %v1465 = vadd.f32 %v1453, %v1345
    %v1466 = vadd.f32 %v1454, %v1346
    %v1467 = vadd.f32 %v1455, %v1347
    %v1468 = vsel %vm1276, 0.7853982, 0.0
    %v1469 = vsel %vm1277, 0.7853982, 0.0
    %v1470 = vsel %vm1278, 0.7853982, 0.0
    %v1471 = vsel %vm1279, 0.7853982, 0.0
    %v1472 = vsel %vm1280, 0.7853982, 0.0
    %v1473 = vsel %vm1281, 0.7853982, 0.0
    %v1474 = vsel %vm1282, 0.7853982, 0.0
    %v1475 = vsel %vm1283, 0.7853982, 0.0
    %v1476 = vsel %vm1284, 0.7853982, 0.0
    %v1477 = vsel %vm1285, 0.7853982, 0.0
    %v1478 = vsel %vm1286, 0.7853982, 0.0
    %v1479 = vsel %vm1287, 0.7853982, 0.0
    %v1480 = vadd.f32 %v1456, %v1468
    %v1481 = vadd.f32 %v1457, %v1469
    %v1482 = vadd.f32 %v1458, %v1470
    %v1483 = vadd.f32 %v1459, %v1471
    %v1484 = vadd.f32 %v1460, %v1472
    %v1485 = vadd.f32 %v1461, %v1473
    %v1486 = vadd.f32 %v1462, %v1474
    %v1487 = vadd.f32 %v1463, %v1475
    %v1488 = vadd.f32 %v1464, %v1476
    %v1489 = vadd.f32 %v1465, %v1477
    %v1490 = vadd.f32 %v1466, %v1478
    %v1491 = vadd.f32 %v1467, %v1479
    %vm1492 = vcmp.gt.f32.partialorder %v1204, %v1192
    %vm1493 = vcmp.gt.f32.partialorder %v1205, %v1193
    %vm1494 = vcmp.gt.f32.partialorder %v1206, %v1194
    %vm1495 = vcmp.gt.f32.partialorder %v1207, %v1195
    %vm1496 = vcmp.gt.f32.partialorder %v1208, %v1196
    %vm1497 = vcmp.gt.f32.partialorder %v1209, %v1197
    %vm1498 = vcmp.gt.f32.partialorder %v1210, %v1198
    %vm1499 = vcmp.gt.f32.partialorder %v1211, %v1199
    %vm1500 = vcmp.gt.f32.partialorder %v1212, %v1200
    %vm1501 = vcmp.gt.f32.partialorder %v1213, %v1201
    %vm1502 = vcmp.gt.f32.partialorder %v1214, %v1202
    %vm1503 = vcmp.gt.f32.partialorder %v1215, %v1203
    %v1504 = vsub.f32 1.5707964, %v1480
    %v1505 = vsub.f32 1.5707964, %v1481
    %v1506 = vsub.f32 1.5707964, %v1482
    %v1507 = vsub.f32 1.5707964, %v1483
    %v1508 = vsub.f32 1.5707964, %v1484
    %v1509 = vsub.f32 1.5707964, %v1485
    %v1510 = vsub.f32 1.5707964, %v1486
    %v1511 = vsub.f32 1.5707964, %v1487
    %v1512 = vsub.f32 1.5707964, %v1488
    %v1513 = vsub.f32 1.5707964, %v1489
    %v1514 = vsub.f32 1.5707964, %v1490
    %v1515 = vsub.f32 1.5707964, %v1491
    %v1516 = vsel %vm1492, %v1504, %v1480
    %v1517 = vsel %vm1493, %v1505, %v1481
    %v1518 = vsel %vm1494, %v1506, %v1482
    %v1519 = vsel %vm1495, %v1507, %v1483
    %v1520 = vsel %vm1496, %v1508, %v1484
    %v1521 = vsel %vm1497, %v1509, %v1485
    %v1522 = vsel %vm1498, %v1510, %v1486
    %v1523 = vsel %vm1499, %v1511, %v1487
    %v1524 = vsel %vm1500, %v1512, %v1488
    %v1525 = vsel %vm1501, %v1513, %v1489
    %v1526 = vsel %vm1502, %v1514, %v1490
    %v1527 = vsel %vm1503, %v1515, %v1491
    %vm1528 = vcmp.lt.f32.partialorder %v567, 0.0
    %vm1529 = vcmp.lt.f32.partialorder %v569, 0.0
    %vm1530 = vcmp.lt.f32.partialorder %v571, 0.0
    %vm1531 = vcmp.lt.f32.partialorder %v573, 0.0
    %vm1532 = vcmp.lt.f32.partialorder %v577, 0.0
    %vm1533 = vcmp.lt.f32.partialorder %v579, 0.0
    %vm1534 = vcmp.lt.f32.partialorder %v581, 0.0
    %vm1535 = vcmp.lt.f32.partialorder %v583, 0.0
    %vm1536 = vcmp.lt.f32.partialorder %v587, 0.0
    %vm1537 = vcmp.lt.f32.partialorder %v589, 0.0
    %vm1538 = vcmp.lt.f32.partialorder %v591, 0.0
    %vm1539 = vcmp.lt.f32.partialorder %v593, 0.0
    %v1540 = vsub.f32 3.1415927, %v1516
    %v1541 = vsub.f32 3.1415927, %v1517
    %v1542 = vsub.f32 3.1415927, %v1518
    %v1543 = vsub.f32 3.1415927, %v1519
    %v1544 = vsub.f32 3.1415927, %v1520
    %v1545 = vsub.f32 3.1415927, %v1521
    %v1546 = vsub.f32 3.1415927, %v1522
    %v1547 = vsub.f32 3.1415927, %v1523
    %v1548 = vsub.f32 3.1415927, %v1524
    %v1549 = vsub.f32 3.1415927, %v1525
    %v1550 = vsub.f32 3.1415927, %v1526
    %v1551 = vsub.f32 3.1415927, %v1527
    %v1552 = vsel %vm1528, %v1540, %v1516
    %v1553 = vsel %vm1529, %v1541, %v1517
    %v1554 = vsel %vm1530, %v1542, %v1518
    %v1555 = vsel %vm1531, %v1543, %v1519
    %v1556 = vsel %vm1532, %v1544, %v1520
    %v1557 = vsel %vm1533, %v1545, %v1521
    %v1558 = vsel %vm1534, %v1546, %v1522
    %v1559 = vsel %vm1535, %v1547, %v1523
    %v1560 = vsel %vm1536, %v1548, %v1524
    %v1561 = vsel %vm1537, %v1549, %v1525
    %v1562 = vsel %vm1538, %v1550, %v1526
    %v1563 = vsel %vm1539, %v1551, %v1527
    %vm1564 = vcmp.lt.f32.partialorder %v660, 0.0
    %vm1565 = vcmp.lt.f32.partialorder %v662, 0.0
    %vm1566 = vcmp.lt.f32.partialorder %v664, 0.0
    %vm1567 = vcmp.lt.f32.partialorder %v666, 0.0
    %vm1568 = vcmp.lt.f32.partialorder %v670, 0.0
    %vm1569 = vcmp.lt.f32.partialorder %v672, 0.0
    %vm1570 = vcmp.lt.f32.partialorder %v674, 0.0
    %vm1571 = vcmp.lt.f32.partialorder %v676, 0.0
    %vm1572 = vcmp.lt.f32.partialorder %v680, 0.0
    %vm1573 = vcmp.lt.f32.partialorder %v682, 0.0
    %vm1574 = vcmp.lt.f32.partialorder %v684, 0.0
    %vm1575 = vcmp.lt.f32.partialorder %v686, 0.0
    %v1576 = vsub.f32 0.0, %v1552
    %v1577 = vsub.f32 0.0, %v1553
    %v1578 = vsub.f32 0.0, %v1554
    %v1579 = vsub.f32 0.0, %v1555
    %v1580 = vsub.f32 0.0, %v1556
    %v1581 = vsub.f32 0.0, %v1557
    %v1582 = vsub.f32 0.0, %v1558
    %v1583 = vsub.f32 0.0, %v1559
    %v1584 = vsub.f32 0.0, %v1560
    %v1585 = vsub.f32 0.0, %v1561
    %v1586 = vsub.f32 0.0, %v1562
    %v1587 = vsub.f32 0.0, %v1563
    %v1588 = vsel %vm1564, %v1576, %v1552
    %v1589 = vsel %vm1565, %v1577, %v1553
    %v1590 = vsel %vm1566, %v1578, %v1554
    %v1591 = vsel %vm1567, %v1579, %v1555
    %v1592 = vsel %vm1568, %v1580, %v1556
    %v1593 = vsel %vm1569, %v1581, %v1557
    %v1594 = vsel %vm1570, %v1582, %v1558
    %v1595 = vsel %vm1571, %v1583, %v1559
    %v1596 = vsel %vm1572, %v1584, %v1560
    %v1597 = vsel %vm1573, %v1585, %v1561
    %v1598 = vsel %vm1574, %v1586, %v1562
    %v1599 = vsel %vm1575, %v1587, %v1563
    %v1600 = vsub.f32 %v1180, %v1588
    %v1601 = vsub.f32 %v1181, %v1589
    %v1602 = vsub.f32 %v1182, %v1590
    %v1603 = vsub.f32 %v1183, %v1591
    %v1604 = vsub.f32 %v1184, %v1592
    %v1605 = vsub.f32 %v1185, %v1593
    %v1606 = vsub.f32 %v1186, %v1594
    %v1607 = vsub.f32 %v1187, %v1595
    %v1608 = vsub.f32 %v1188, %v1596
    %v1609 = vsub.f32 %v1189, %v1597
    %v1610 = vsub.f32 %v1190, %v1598
    %v1611 = vsub.f32 %v1191, %v1599
    %v1612 = vmul.f32 %v1600, %v1600
    %v1613 = vmul.f32 %v1601, %v1601
    %v1614 = vmul.f32 %v1602, %v1602
    %v1615 = vmul.f32 %v1603, %v1603
    %v1616 = vmul.f32 %v1604, %v1604
    %v1617 = vmul.f32 %v1605, %v1605
    %v1618 = vmul.f32 %v1606, %v1606
    %v1619 = vmul.f32 %v1607, %v1607
    %v1620 = vmul.f32 %v1608, %v1608
    %v1621 = vmul.f32 %v1609, %v1609
    %v1622 = vmul.f32 %v1610, %v1610
    %v1623 = vmul.f32 %v1611, %v1611
    %v1624 = vadd.f32 %v1612, %v1613
    %v1625 = vadd.f32 %v1624, %v1614
    %v1626 = vadd.f32 %v1625, %v1615
    %v1627 = vadd.f32 %v1626, %v1616
    %v1628 = vadd.f32 %v1627, %v1617
    %v1629 = vadd.f32 %v1628, %v1618
    %v1630 = vadd.f32 %v1629, %v1619
    %v1631 = vadd.f32 %v1630, %v1620
    %v1632 = vadd.f32 %v1631, %v1621
    %v1633 = vadd.f32 %v1632, %v1622
    %v1634 = vadd.f32 %v1633, %v1623
    %1635 = vadd.xlane.f32.xlu0 %v1634
    %v1636 = vpop.xlane.xlu0 %1635
    %v1637 = vrot.slane %v1636, 4
    %v1638 = vadd.f32 %v1636, %v1637
    %v1639 = vrot.slane %v1638, 2
    %v1640 = vadd.f32 %v1638, %v1639
    %v1641 = vrot.slane %v1640, 1
    %v1642 = vadd.f32 %v1640, %v1641
    %s1643 = vtos %v1642
    %v1644 = vstv %s1643
    %vm1645 = vcmask 0
    %1646 = vst.msk [vmem:[#allocation12] sm:$0x1] %vm1645, %v1644
    %v1647 = vrsqrt.pop %v724
    %v1648 = vmul.f32 %v724, %v1647
    %vm1649 = vcmp.eq.f32.partialorder %v724, inf
    %v1650 = vsel %vm1649, %v724, %v1648
    %vm1651 = vcmp.eq.f32.partialorder %v724, 0.0
    %v1652 = vand.u32 %v724, 2147483648
    %v1653 = vsel %vm1651, %v1652, %v1650
    %v1654 = vrsqrt.pop %v725
    %v1655 = vmul.f32 %v725, %v1654
    %vm1656 = vcmp.eq.f32.partialorder %v725, inf
    %v1657 = vsel %vm1656, %v725, %v1655
    %vm1658 = vcmp.eq.f32.partialorder %v725, 0.0
    %v1659 = vand.u32 %v725, 2147483648
    %v1660 = vsel %vm1658, %v1659, %v1657
    %v1661 = vrsqrt.pop %v726
    %v1662 = vmul.f32 %v726, %v1661
    %vm1663 = vcmp.eq.f32.partialorder %v726, inf
    %v1664 = vsel %vm1663, %v726, %v1662
    %vm1665 = vcmp.eq.f32.partialorder %v726, 0.0
    %v1666 = vand.u32 %v726, 2147483648
    %v1667 = vsel %vm1665, %v1666, %v1664
    %v1668 = vrsqrt.pop %v727
    %v1669 = vmul.f32 %v727, %v1668
    %vm1670 = vcmp.eq.f32.partialorder %v727, inf
    %v1671 = vsel %vm1670, %v727, %v1669
    %vm1672 = vcmp.eq.f32.partialorder %v727, 0.0
    %v1673 = vand.u32 %v727, 2147483648
    %v1674 = vsel %vm1672, %v1673, %v1671
    %v1675 = vrsqrt.pop %v728
    %v1676 = vmul.f32 %v728, %v1675
    %vm1677 = vcmp.eq.f32.partialorder %v728, inf
    %v1678 = vsel %vm1677, %v728, %v1676
    %vm1679 = vcmp.eq.f32.partialorder %v728, 0.0
    %v1680 = vand.u32 %v728, 2147483648
    %v1681 = vsel %vm1679, %v1680, %v1678
    %v1682 = vrsqrt.pop %v729
    %v1683 = vmul.f32 %v729, %v1682
    %vm1684 = vcmp.eq.f32.partialorder %v729, inf
    %v1685 = vsel %vm1684, %v729, %v1683
    %vm1686 = vcmp.eq.f32.partialorder %v729, 0.0
    %v1687 = vand.u32 %v729, 2147483648
    %v1688 = vsel %vm1686, %v1687, %v1685
    %v1689 = vrsqrt.pop %v730
    %v1690 = vmul.f32 %v730, %v1689
    %vm1691 = vcmp.eq.f32.partialorder %v730, inf
    %v1692 = vsel %vm1691, %v730, %v1690
    %vm1693 = vcmp.eq.f32.partialorder %v730, 0.0
    %v1694 = vand.u32 %v730, 2147483648
    %v1695 = vsel %vm1693, %v1694, %v1692
    %v1696 = vrsqrt.pop %v731
    %v1697 = vmul.f32 %v731, %v1696
    %vm1698 = vcmp.eq.f32.partialorder %v731, inf
    %v1699 = vsel %vm1698, %v731, %v1697
    %vm1700 = vcmp.eq.f32.partialorder %v731, 0.0
    %v1701 = vand.u32 %v731, 2147483648
    %v1702 = vsel %vm1700, %v1701, %v1699
    %v1703 = vrsqrt.pop %v732
    %v1704 = vmul.f32 %v732, %v1703
    %vm1705 = vcmp.eq.f32.partialorder %v732, inf
    %v1706 = vsel %vm1705, %v732, %v1704
    %vm1707 = vcmp.eq.f32.partialorder %v732, 0.0
    %v1708 = vand.u32 %v732, 2147483648
    %v1709 = vsel %vm1707, %v1708, %v1706
    %v1710 = vrsqrt.pop %v733
    %v1711 = vmul.f32 %v733, %v1710
    %vm1712 = vcmp.eq.f32.partialorder %v733, inf
    %v1713 = vsel %vm1712, %v733, %v1711
    %vm1714 = vcmp.eq.f32.partialorder %v733, 0.0
    %v1715 = vand.u32 %v733, 2147483648
    %v1716 = vsel %vm1714, %v1715, %v1713
    %v1717 = vrsqrt.pop %v734
    %v1718 = vmul.f32 %v734, %v1717
    %vm1719 = vcmp.eq.f32.partialorder %v734, inf
    %v1720 = vsel %vm1719, %v734, %v1718
    %vm1721 = vcmp.eq.f32.partialorder %v734, 0.0
    %v1722 = vand.u32 %v734, 2147483648
    %v1723 = vsel %vm1721, %v1722, %v1720
    %v1724 = vrsqrt.pop %v735
    %v1725 = vmul.f32 %v735, %v1724
    %vm1726 = vcmp.eq.f32.partialorder %v735, inf
    %v1727 = vsel %vm1726, %v735, %v1725
    %vm1728 = vcmp.eq.f32.partialorder %v735, 0.0
    %v1729 = vand.u32 %v735, 2147483648
    %v1730 = vsel %vm1728, %v1729, %v1727
    %v1731 = vrsqrt.pop %v772
    %v1732 = vmul.f32 %v772, %v1731
    %vm1733 = vcmp.eq.f32.partialorder %v772, inf
    %v1734 = vsel %vm1733, %v772, %v1732
    %vm1735 = vcmp.eq.f32.partialorder %v772, 0.0
    %v1736 = vand.u32 %v772, 2147483648
    %v1737 = vsel %vm1735, %v1736, %v1734
    %v1738 = vrsqrt.pop %v773
    %v1739 = vmul.f32 %v773, %v1738
    %vm1740 = vcmp.eq.f32.partialorder %v773, inf
    %v1741 = vsel %vm1740, %v773, %v1739
    %vm1742 = vcmp.eq.f32.partialorder %v773, 0.0
    %v1743 = vand.u32 %v773, 2147483648
    %v1744 = vsel %vm1742, %v1743, %v1741
    %v1745 = vrsqrt.pop %v774
    %v1746 = vmul.f32 %v774, %v1745
    %vm1747 = vcmp.eq.f32.partialorder %v774, inf
    %v1748 = vsel %vm1747, %v774, %v1746
    %vm1749 = vcmp.eq.f32.partialorder %v774, 0.0
    %v1750 = vand.u32 %v774, 2147483648
    %v1751 = vsel %vm1749, %v1750, %v1748
    %v1752 = vrsqrt.pop %v775
    %v1753 = vmul.f32 %v775, %v1752
    %vm1754 = vcmp.eq.f32.partialorder %v775, inf
    %v1755 = vsel %vm1754, %v775, %v1753
    %vm1756 = vcmp.eq.f32.partialorder %v775, 0.0
    %v1757 = vand.u32 %v775, 2147483648
    %v1758 = vsel %vm1756, %v1757, %v1755
    %v1759 = vrsqrt.pop %v776
    %v1760 = vmul.f32 %v776, %v1759
    %vm1761 = vcmp.eq.f32.partialorder %v776, inf
    %v1762 = vsel %vm1761, %v776, %v1760
    %vm1763 = vcmp.eq.f32.partialorder %v776, 0.0
    %v1764 = vand.u32 %v776, 2147483648
    %v1765 = vsel %vm1763, %v1764, %v1762
    %v1766 = vrsqrt.pop %v777
    %v1767 = vmul.f32 %v777, %v1766
    %vm1768 = vcmp.eq.f32.partialorder %v777, inf
    %v1769 = vsel %vm1768, %v777, %v1767
    %vm1770 = vcmp.eq.f32.partialorder %v777, 0.0
    %v1771 = vand.u32 %v777, 2147483648
    %v1772 = vsel %vm1770, %v1771, %v1769
    %v1773 = vrsqrt.pop %v778
    %v1774 = vmul.f32 %v778, %v1773
    %vm1775 = vcmp.eq.f32.partialorder %v778, inf
    %v1776 = vsel %vm1775, %v778, %v1774
    %vm1777 = vcmp.eq.f32.partialorder %v778, 0.0
    %v1778 = vand.u32 %v778, 2147483648
    %v1779 = vsel %vm1777, %v1778, %v1776
    %v1780 = vrsqrt.pop %v779
    %v1781 = vmul.f32 %v779, %v1780
    %vm1782 = vcmp.eq.f32.partialorder %v779, inf
    %v1783 = vsel %vm1782, %v779, %v1781
    %vm1784 = vcmp.eq.f32.partialorder %v779, 0.0
    %v1785 = vand.u32 %v779, 2147483648
    %v1786 = vsel %vm1784, %v1785, %v1783
    %v1787 = vrsqrt.pop %v780
    %v1788 = vmul.f32 %v780, %v1787
    %vm1789 = vcmp.eq.f32.partialorder %v780, inf
    %v1790 = vsel %vm1789, %v780, %v1788
    %vm1791 = vcmp.eq.f32.partialorder %v780, 0.0
    %v1792 = vand.u32 %v780, 2147483648
    %v1793 = vsel %vm1791, %v1792, %v1790
    %v1794 = vrsqrt.pop %v781
    %v1795 = vmul.f32 %v781, %v1794
    %vm1796 = vcmp.eq.f32.partialorder %v781, inf
    %v1797 = vsel %vm1796, %v781, %v1795
    %vm1798 = vcmp.eq.f32.partialorder %v781, 0.0
    %v1799 = vand.u32 %v781, 2147483648
    %v1800 = vsel %vm1798, %v1799, %v1797
    %v1801 = vrsqrt.pop %v782
    %v1802 = vmul.f32 %v782, %v1801
    %vm1803 = vcmp.eq.f32.partialorder %v782, inf
    %v1804 = vsel %vm1803, %v782, %v1802
    %vm1805 = vcmp.eq.f32.partialorder %v782, 0.0
    %v1806 = vand.u32 %v782, 2147483648
    %v1807 = vsel %vm1805, %v1806, %v1804
    %v1808 = vrsqrt.pop %v783
    %v1809 = vmul.f32 %v783, %v1808
    %vm1810 = vcmp.eq.f32.partialorder %v783, inf
    %v1811 = vsel %vm1810, %v783, %v1809
    %vm1812 = vcmp.eq.f32.partialorder %v783, 0.0
    %v1813 = vand.u32 %v783, 2147483648
    %v1814 = vsel %vm1812, %v1813, %v1811
    %v1815 = vsub.f32 %v1737, %v1653
    %v1816 = vsub.f32 %v1744, %v1660
    %v1817 = vsub.f32 %v1751, %v1667
    %v1818 = vsub.f32 %v1758, %v1674
    %v1819 = vsub.f32 %v1765, %v1681
    %v1820 = vsub.f32 %v1772, %v1688
    %v1821 = vsub.f32 %v1779, %v1695
    %v1822 = vsub.f32 %v1786, %v1702
    %v1823 = vsub.f32 %v1793, %v1709
    %v1824 = vsub.f32 %v1800, %v1716
    %v1825 = vsub.f32 %v1807, %v1723
    %v1826 = vsub.f32 %v1814, %v1730
    %v1827 = vmul.f32 %v1815, %v1815
    %v1828 = vmul.f32 %v1816, %v1816
    %v1829 = vmul.f32 %v1817, %v1817
    %v1830 = vmul.f32 %v1818, %v1818
    %v1831 = vmul.f32 %v1819, %v1819
    %v1832 = vmul.f32 %v1820, %v1820
    %v1833 = vmul.f32 %v1821, %v1821
    %v1834 = vmul.f32 %v1822, %v1822
    %v1835 = vmul.f32 %v1823, %v1823
    %v1836 = vmul.f32 %v1824, %v1824
    %v1837 = vmul.f32 %v1825, %v1825
    %v1838 = vmul.f32 %v1826, %v1826
    %v1839 = vadd.f32 %v1827, %v1828
    %v1840 = vadd.f32 %v1839, %v1829
    %v1841 = vadd.f32 %v1840, %v1830
    %v1842 = vadd.f32 %v1841, %v1831
    %v1843 = vadd.f32 %v1842, %v1832
    %v1844 = vadd.f32 %v1843, %v1833
    %v1845 = vadd.f32 %v1844, %v1834
    %v1846 = vadd.f32 %v1845, %v1835
    %v1847 = vadd.f32 %v1846, %v1836
    %v1848 = vadd.f32 %v1847, %v1837
    %v1849 = vadd.f32 %v1848, %v1838
    %1850 = vadd.xlane.f32.xlu0 %v1849
    %v1851 = vpop.xlane.xlu0 %1850
    %v1852 = vrot.slane %v1851, 4
    %v1853 = vadd.f32 %v1851, %v1852
    %v1854 = vrot.slane %v1853, 2
    %v1855 = vadd.f32 %v1853, %v1854
    %v1856 = vrot.slane %v1855, 1
    %v1857 = vadd.f32 %v1855, %v1856
    %s1858 = vtos %v1857
    %v1859 = vstv %s1858
    %1860 = vst.msk [vmem:[#allocation9] sm:$0x1] %vm1645, %v1859
    %v1861 = vadd.f32 %v772, %v773
    %v1862 = vadd.f32 %v1861, %v774
    %v1863 = vadd.f32 %v1862, %v775
    %v1864 = vadd.f32 %v1863, %v776
    %v1865 = vadd.f32 %v1864, %v777
    %v1866 = vadd.f32 %v1865, %v778
    %v1867 = vadd.f32 %v1866, %v779
    %v1868 = vadd.f32 %v1867, %v780
    %v1869 = vadd.f32 %v1868, %v781
    %v1870 = vadd.f32 %v1869, %v782
    %v1871 = vadd.f32 %v1870, %v783
    %1872 = vadd.xlane.f32.xlu0 %v1871
    %v1873 = vpop.xlane.xlu0 %1872
    %v1874 = vrot.slane %v1873, 4
    %v1875 = vadd.f32 %v1873, %v1874
    %v1876 = vrot.slane %v1875, 2
    %v1877 = vadd.f32 %v1875, %v1876
    %v1878 = vrot.slane %v1877, 1
    %v1879 = vadd.f32 %v1877, %v1878
    %s1880 = vtos %v1879
    %v1881 = vstv %s1880
    %1882 = vst.msk [vmem:[#allocation11] sm:$0x1] %vm1645, %v1881
    %v1883 = vrcp.pop %v724
    %v1884 = vrcp.pop %v725
    %v1885 = vrcp.pop %v726
    %v1886 = vrcp.pop %v727
    %v1887 = vrcp.pop %v728
    %v1888 = vrcp.pop %v729
    %v1889 = vrcp.pop %v730
    %v1890 = vrcp.pop %v731
    %v1891 = vrcp.pop %v732
    %v1892 = vrcp.pop %v733
    %v1893 = vrcp.pop %v734
    %v1894 = vrcp.pop %v735
    %v1895 = vmul.f32 %v772, %v1883
    %v1896 = vmul.f32 %v773, %v1884
    %v1897 = vmul.f32 %v774, %v1885
    %v1898 = vmul.f32 %v775, %v1886
    %v1899 = vmul.f32 %v776, %v1887
    %v1900 = vmul.f32 %v777, %v1888
    %v1901 = vmul.f32 %v778, %v1889
    %v1902 = vmul.f32 %v779, %v1890
    %v1903 = vmul.f32 %v780, %v1891
    %v1904 = vmul.f32 %v781, %v1892
    %v1905 = vmul.f32 %v782, %v1893
    %v1906 = vmul.f32 %v783, %v1894
    %v1907 = vlog2.pop %v1895
    %v1908 = vmul.f32 %v1907, 0.6931472
    %v1909 = vlog2.pop %v1896
    %v1910 = vmul.f32 %v1909, 0.6931472
    %v1911 = vlog2.pop %v1897
    %v1912 = vmul.f32 %v1911, 0.6931472
    %v1913 = vlog2.pop %v1898
    %v1914 = vmul.f32 %v1913, 0.6931472
    %v1915 = vlog2.pop %v1899
    %v1916 = vmul.f32 %v1915, 0.6931472
    %v1917 = vlog2.pop %v1900
    %v1918 = vmul.f32 %v1917, 0.6931472
    %v1919 = vlog2.pop %v1901
    %v1920 = vmul.f32 %v1919, 0.6931472
    %v1921 = vlog2.pop %v1902
    %v1922 = vmul.f32 %v1921, 0.6931472
    %v1923 = vlog2.pop %v1903
    %v1924 = vmul.f32 %v1923, 0.6931472
    %v1925 = vlog2.pop %v1904
    %v1926 = vmul.f32 %v1925, 0.6931472
    %v1927 = vlog2.pop %v1905
    %v1928 = vmul.f32 %v1927, 0.6931472
    %v1929 = vlog2.pop %v1906
    %v1930 = vmul.f32 %v1929, 0.6931472
    %v1931 = vand.u32 2147483647, %v1908
    %v1932 = vand.u32 2147483647, %v1910
    %v1933 = vand.u32 2147483647, %v1912
    %v1934 = vand.u32 2147483647, %v1914
    %v1935 = vand.u32 2147483647, %v1916
    %v1936 = vand.u32 2147483647, %v1918
    %v1937 = vand.u32 2147483647, %v1920
    %v1938 = vand.u32 2147483647, %v1922
    %v1939 = vand.u32 2147483647, %v1924
    %v1940 = vand.u32 2147483647, %v1926
    %v1941 = vand.u32 2147483647, %v1928
    %v1942 = vand.u32 2147483647, %v1930
    %v1943 = vadd.f32 %v1931, %v1932
    %v1944 = vadd.f32 %v1943, %v1933
    %v1945 = vadd.f32 %v1944, %v1934
    %v1946 = vadd.f32 %v1945, %v1935
    %v1947 = vadd.f32 %v1946, %v1936
    %v1948 = vadd.f32 %v1947, %v1937
    %v1949 = vadd.f32 %v1948, %v1938
    %v1950 = vadd.f32 %v1949, %v1939
    %v1951 = vadd.f32 %v1950, %v1940
    %v1952 = vadd.f32 %v1951, %v1941
    %v1953 = vadd.f32 %v1952, %v1942
    %1954 = vadd.xlane.f32.xlu0 %v1953
    %v1955 = vpop.xlane.xlu0 %1954
    %v1956 = vrot.slane %v1955, 4
    %v1957 = vadd.f32 %v1955, %v1956
    %v1958 = vrot.slane %v1957, 2
    %v1959 = vadd.f32 %v1957, %v1958
    %v1960 = vrot.slane %v1959, 1
    %v1961 = vadd.f32 %v1959, %v1960
    %s1962 = vtos %v1961
    %s1963 = smul.f32 %s1962, 0.5
    %v1964 = vstv %s1963
    %1965 = vst.msk [vmem:[#allocation8] sm:$0x1] %vm1645, %v1964
    // Predicated region
    $region18: #{tpu_custom_call.1} parent=1 // pred_check
      _
    $region19: #{tpu_custom_call.1} parent=1 // pred_check_branch
      %1967 = sbr.rel (0) target = $region21
    $region20: #{tpu_custom_call.1} parent=1 // pred_region
      %s1969 = ssub.s32 16, 16
      %1970 = vsyncadd [#allocation5], %s1969
      %s1972 = sshll.u32 [#allocation8], 4
      %s1973 = int_to_ptr.vmem [resolvable:$true] %s1972
      %1975 = dma.vmem_to_hbm [thread:$0]  %s1973, 16, %s2, [#allocation5]
    $region21: #{tpu_custom_call.1} parent=1 // pred_fallthru
      _
    // Predicated region
    $region22: #{tpu_custom_call.1} parent=1 // pred_check
      _
    $region23: #{tpu_custom_call.1} parent=1 // pred_check_branch
      %1977 = sbr.rel (0) target = $region25
    $region24: #{tpu_custom_call.1} parent=1 // pred_region
      %s1979 = ssub.s32 16, 16
      %1980 = vsyncadd [#allocation10], %s1979
      %s1982 = sshll.u32 [#allocation9], 4
      %s1983 = int_to_ptr.vmem [resolvable:$true] %s1982
      %1985 = dma.vmem_to_hbm [thread:$0]  %s1983, 16, %s3, [#allocation10]
    $region25: #{tpu_custom_call.1} parent=1 // pred_fallthru
      _
    // Predicated region
    $region26: #{tpu_custom_call.1} parent=1 // pred_check
      _
    $region27: #{tpu_custom_call.1} parent=1 // pred_check_branch
      %1987 = sbr.rel (0) target = $region29
    $region28: #{tpu_custom_call.1} parent=1 // pred_region
      %s1989 = ssub.s32 16, 16
      %1990 = vsyncadd [#allocation10], %s1989
      %s1992 = sshll.u32 [#allocation11], 4
      %s1993 = int_to_ptr.vmem [resolvable:$true] %s1992
      %1995 = dma.vmem_to_hbm [thread:$0]  %s1993, 16, %s4, [#allocation10]
    $region29: #{tpu_custom_call.1} parent=1 // pred_fallthru
      _
    // Predicated region
    $region30: #{tpu_custom_call.1} parent=1 // pred_check
      _
    $region31: #{tpu_custom_call.1} parent=1 // pred_check_branch
      %1997 = sbr.rel (0) target = $region33
    $region32: #{tpu_custom_call.1} parent=1 // pred_region
      %s1999 = ssub.s32 16, 16
      %2000 = vsyncadd [#allocation13], %s1999
      %s2002 = sshll.u32 [#allocation12], 4
      %s2003 = int_to_ptr.vmem [resolvable:$true] %s2002
      %2005 = dma.vmem_to_hbm [thread:$0]  %s2003, 16, %s5, [#allocation13]
    $region33: #{tpu_custom_call.1} parent=1 // pred_fallthru
      _
    // Predicated region
    $region34: #{tpu_custom_call.1} parent=1 // pred_check
      _
    $region35: #{tpu_custom_call.1} parent=1 // pred_check_branch
      %2007 = sbr.rel (0) target = $region37
    $region36: #{tpu_custom_call.1} parent=1 // pred_region
      %2008 = dma.done [#allocation5], 16
    $region37: #{tpu_custom_call.1} parent=1 // pred_fallthru
      _
    // Predicated region
    $region38: #{tpu_custom_call.1} parent=1 // pred_check
      _
    $region39: #{tpu_custom_call.1} parent=1 // pred_check_branch
      %2010 = sbr.rel (0) target = $region41
    $region40: #{tpu_custom_call.1} parent=1 // pred_region
      %2011 = dma.done [#allocation10], 16
    $region41: #{tpu_custom_call.1} parent=1 // pred_fallthru
      _
    // Predicated region
    $region42: #{tpu_custom_call.1} parent=1 // pred_check
      _
    $region43: #{tpu_custom_call.1} parent=1 // pred_check_branch
      %2013 = sbr.rel (0) target = $region45
    $region44: #{tpu_custom_call.1} parent=1 // pred_region
      %2014 = dma.done [#allocation10], 16
    $region45: #{tpu_custom_call.1} parent=1 // pred_fallthru
      _
    // Predicated region
    $region46: #{tpu_custom_call.1} parent=1 // pred_check
      _
    $region47: #{tpu_custom_call.1} parent=1 // pred_check_branch
      %2016 = sbr.rel (0) target = $region49
    $region48: #{tpu_custom_call.1} parent=1 // pred_region
      %2017 = dma.done [#allocation13], 16
    $region49: #{tpu_custom_call.1} parent=1 // pred_fallthru
      _
    %2018 = vsyncpa [#allocation4], 1
    %2019 = vsyncpa [#allocation7], 1
    %2020 = vsyncpa [#allocation5], 1
    %2021 = vsyncpa [#allocation10], 1
    %2022 = vsyncpa [#allocation13], 1

</llo_original>
